<compile_context>
chip_gen: v6e
topology: v6e:2x2x1
jax: 0.10.0
libtpu: 0.0.40
codegen_flags: <defaults>
</compile_context>

<pallas_src>
import functools

import jax
import jax.numpy as jnp
import numpy as np
from jax.experimental import pallas as pl
from jax.experimental.pallas import tpu as pltpu


# ----------------------------------------------------------------------------- kernel
def bottleneck_kernel(x_ref, w1_ref, w2_ref, w3_ref, bias_ref, wd_ref, wu_ref,
                      out_ref, *, bt, seg_len):
    L = seg_len
    x = x_ref[...]                               # (Cin, bt*L) f32, bt batches packed on lanes
    cin, ntot = x.shape
    planes = w1_ref.shape[0]
    c3 = w3_ref.shape[0]

    # lane position within each packed batch segment (for conv "same"-padding edge masks)
    lane = jax.lax.broadcasted_iota(jnp.int32, (1, ntot), 1)
    l_local = lane % L

    mask_cache = {}                              # reuse masks across convs (same offsets)

    def edge_mask(d):                            # valid iff 0 <= l_local + d < L
        if d not in mask_cache:
            mask_cache[d] = (l_local >= -d) if d < 0 else (l_local < L - d)
        return mask_cache[d]

    def conv1d(inp, wf_ref):
        # wf_ref: (Cout, K*Cin) with BN scale already folded in.  "same" pad, stride 1.
        ci = inp.shape[0]
        K = wf_ref.shape[1] // ci
        P = K // 2
        slabs = []
        for k in range(K):                       # static unroll over taps
            d = k - P                            # tap k needs inp[:, l + d]
            if d == 0:
                slabs.append(inp)
            else:
                rolled = pltpu.roll(inp, shift=(-d) % ntot, axis=1)  # rolled[l] = inp[l+d]
                slabs.append(jnp.where(edge_mask(d), rolled, 0.0))
        col = jnp.concatenate(slabs, axis=0)     # (K*Cin, bt*L) im2col slab
        return jnp.dot(wf_ref[...], col, preferred_element_type=jnp.float32)

    p8 = lambda n: ((n + 7) // 8) * 8            # bias segments are padded to sublane tiles
    b1 = bias_ref[pl.ds(0, planes), :]                   # (planes, 1)
    b2 = bias_ref[pl.ds(p8(planes), planes), :]          # (planes, 1)
    b3 = bias_ref[pl.ds(2 * p8(planes), c3), :]          # (C3, 1)

    # conv1 (+ folded bn1 scale) -> bias -> relu
    out = jnp.maximum(conv1d(x, w1_ref) + b1, 0.0)
    # conv2 (+ folded bn2 scale) -> bias -> relu   (stride = 1)
    out = jnp.maximum(conv1d(out, w2_ref) + b2, 0.0)
    # TODO(synk): nn.Dropout(0.2) is treated as identity (eval-mode semantics).
    # conv3 (+ folded bn3 scale) -> bias
    out = conv1d(out, w3_ref) + b3                       # (C3, bt*L)

    # Squeeze-and-Excitation on VPU/XLU (MXU shapes here would be degenerate)
    out3 = out.reshape(c3, bt, L)
    pooled = jnp.mean(out3, axis=-1)                     # (C3, bt)  per-batch global pool
    wd = wd_ref[...]                                     # (Cd, C3)
    wu = wu_ref[...]                                     # (C3, Cd)
    se = jnp.sum(wd[:, :, None] * pooled[None, :, :], axis=1)   # (Cd, bt)
    se = jnp.maximum(se, 0.0)
    se = jnp.sum(wu[:, :, None] * se[None, :, :], axis=1)       # (C3, bt)
    se = jax.nn.sigmoid(se)

    # scale * out + residual (downsample=None => Cin == C3), relu
    res3 = se[:, :, None] * out3 + x.reshape(c3, bt, L)
    out_ref[...] = jnp.maximum(res3, 0.0).reshape(c3, ntot)


# ---------------------------------------------------------------------------- wrapper
def _pick_bt(B, L):
    # Pack several batch elements along lanes.  Block lane width must be a multiple of
    # 128 (or span the whole array).  Cap at ~1024 lanes so large batches still leave
    # >= 2 grid steps for megacore sharding on v7x.
    for d in range(B, 0, -1):
        if B % d == 0 and (d * L) % 128 == 0 and d * L <= 1024:
            return d
    return B


@jax.jit
def bottleneck_forward(x, w1f, w2f, w3f, bias_all, wd2, wu2):
    B, cin, L = x.shape
    c3 = w3f.shape[0]
    assert cin == c3, (
        "downsample=None & stride=1: residual add requires inplanes == planes * 4")

    bt = _pick_bt(B, L)
    ntot = bt * L
    grid = (B // bt,)

    # layout plumbing in the wrapper: present a lane-dense (C, B*L) slab to the kernel
    x2 = jnp.transpose(x, (1, 0, 2)).reshape(cin, B * L)

    full = lambda a: pl.BlockSpec(a.shape, lambda g: (0,) * a.ndim)

    out2 = pl.pallas_call(
        functools.partial(bottleneck_kernel, bt=bt, seg_len=L),
        out_shape=jax.ShapeDtypeStruct((c3, B * L), jnp.float32),
        grid_spec=pltpu.PrefetchScalarGridSpec(
            num_scalar_prefetch=0,
            grid=grid,
            in_specs=[
                pl.BlockSpec((cin, ntot), lambda g: (0, g)),
                full(w1f), full(w2f), full(w3f),
                full(bias_all), full(wd2), full(wu2),
            ],
            out_specs=pl.BlockSpec((c3, ntot), lambda g: (0, g)),
        ),
        compiler_params=pltpu.CompilerParams(
            dimension_semantics=("parallel",)),
    )(x2, w1f, w2f, w3f, bias_all, wd2, wu2)

    return out2.reshape(c3, B, L).transpose(1, 0, 2)


# ------------------------------------------------------------------ parameter packing
def fold_bn(gamma, beta, mean, var, eps=1e-5):
    scale = gamma / jnp.sqrt(var + eps)
    bias = beta - mean * scale
    return scale, bias


def pack_conv(w, scale):
    # w: PyTorch OIH (Cout, Cin, K).  Fold eval-mode BN scale per output channel and
    # flatten to (Cout, K*Cin) so the whole conv is a single MXU matmul against the
    # im2col slab built in-kernel (row order k*Cin + i matches the slab concat order).
    cout, cin, K = w.shape
    w = w * scale[:, None, None]
    return jnp.transpose(w, (0, 2, 1)).reshape(cout, K * cin)


def pack_bias(biases):
    # One packed VMEM column array; each segment padded to a multiple of 8 sublanes so
    # in-kernel slices start on sublane-tile boundaries.
    segs = []
    for b in biases:
        pad = (-b.shape[0]) % 8
        segs.append(jnp.pad(b, (0, pad)))
    return jnp.concatenate(segs).reshape(-1, 1)


# --------------------------------------------------------------------- pure-JAX reference
def conv1d_ref(x, w, pad, stride=1):
    return jax.lax.conv_general_dilated(
        x, w, window_strides=(stride,), padding=((pad, pad),),
        dimension_numbers=("NCH", "OIH", "NCH"))


def bn_ref(x, gamma, beta, mean, var, eps=1e-5):
    return (x - mean[None, :, None]) / jnp.sqrt(var[None, :, None] + eps) \
        * gamma[None, :, None] + beta[None, :, None]


def bottleneck_ref(x, p):
    out = jax.nn.relu(bn_ref(conv1d_ref(x, p["w1"], 3), *p["bn1"]))
    out = jax.nn.relu(bn_ref(conv1d_ref(out, p["w2"], 5), *p["bn2"]))
    out = bn_ref(conv1d_ref(out, p["w3"], 3), *p["bn3"])
    pooled = jnp.mean(out, axis=-1, keepdims=True)
    se = jax.nn.relu(conv1d_ref(pooled, p["wd"], 0))
    se = jax.nn.sigmoid(conv1d_ref(se, p["wu"], 0))
    return jax.nn.relu(se * out + x)


# ------------------------------------------------------------------------------- main
if __name__ == "__main__":
    B, L = 2, 128
    planes = 4
    inplanes = planes * 4          # residual add needs inplanes == planes * expansion
    C3 = planes * 4
    Cd = planes // 4

    key = jax.random.PRNGKey(0)
    ks = jax.random.split(key, 20)
    f32 = jnp.float32

    # conv weights (PyTorch OIH layout), deterministic init
    w1 = jax.random.normal(ks[0], (planes, inplanes, 7), f32) * 0.1
    w2 = jax.random.normal(ks[1], (planes, planes, 11), f32) * 0.1
    w3 = jax.random.normal(ks[2], (C3, planes, 7), f32) * 0.1
    wd = jax.random.normal(ks[3], (Cd, C3, 1), f32) * 0.1
    wu = jax.random.normal(ks[4], (C3, Cd, 1), f32) * 0.1

    def bn_params(k, c):
        k1, k2, k3, k4 = jax.random.split(k, 4)
        gamma = 1.0 + 0.1 * jax.random.normal(k1, (c,), f32)
        beta = 0.1 * jax.random.normal(k2, (c,), f32)
        mean = 0.1 * jax.random.normal(k3, (c,), f32)
        var = 1.0 + 0.5 * jax.random.uniform(k4, (c,), f32)
        return gamma, beta, mean, var

    bn1 = bn_params(ks[5], planes)
    bn2 = bn_params(ks[6], planes)
    bn3 = bn_params(ks[7], C3)

    x = jax.random.normal(ks[8], (B, inplanes, L), f32)

    # ---- pack parameters for the kernel (fold BN scale into weights, flatten taps) ----
    s1, b1 = fold_bn(*bn1)
    s2, b2 = fold_bn(*bn2)
    s3, b3 = fold_bn(*bn3)

    w1f = pack_conv(w1, s1)        # (planes, 7*inplanes)
    w2f = pack_conv(w2, s2)        # (planes, 11*planes)
    w3f = pack_conv(w3, s3)        # (C3, 7*planes)
    bias_all = pack_bias([b1, b2, b3])
    wd2 = wd[:, :, 0]              # (Cd, C3)
    wu2 = wu[:, :, 0]              # (C3, Cd)

    out = bottleneck_forward(x, w1f, w2f, w3f, bias_all, wd2, wu2)
    out = jax.block_until_ready(out)

    ref = bottleneck_ref(x, {"w1": w1, "w2": w2, "w3": w3, "wd": wd, "wu": wu,
                             "bn1": bn1, "bn2": bn2, "bn3": bn3})
    np.testing.assert_allclose(np.asarray(out), np.asarray(ref), rtol=2e-4, atol=2e-4)

    print("KERNEL_OK")
</pallas_src>

<mosaic_0001>
module attributes {stable_mosaic.version = 11 : i64} {
  func.func @bottleneck_kernel(%arg0: i32, %arg1: memref<16x256xf32, #tpu.memory_space<vmem>>, %arg2: memref<4x112xf32, #tpu.memory_space<vmem>>, %arg3: memref<4x44xf32, #tpu.memory_space<vmem>>, %arg4: memref<16x28xf32, #tpu.memory_space<vmem>>, %arg5: memref<32x1xf32, #tpu.memory_space<vmem>>, %arg6: memref<1x16xf32, #tpu.memory_space<vmem>>, %arg7: memref<16x1xf32, #tpu.memory_space<vmem>>, %arg8: memref<16x256xf32, #tpu.memory_space<vmem>>) attributes {dimension_semantics = [#tpu.dimension_semantics<parallel>], iteration_bounds = array<i64: 1>, scalar_prefetch = 0 : i64, scratch_operands = 0 : i64, tpu.core_type = #tpu.core_type<tc>, window_params = [{transform_indices = @transform_0, window_bounds = array<i64: 16, 256>}, {pipeline_mode = #tpu.pipeline_mode<synchronous>, transform_indices = @transform_1, window_bounds = array<i64: 4, 112>}, {pipeline_mode = #tpu.pipeline_mode<synchronous>, transform_indices = @transform_2, window_bounds = array<i64: 4, 44>}, {pipeline_mode = #tpu.pipeline_mode<synchronous>, transform_indices = @transform_3, window_bounds = array<i64: 16, 28>}, {pipeline_mode = #tpu.pipeline_mode<synchronous>, transform_indices = @transform_4, window_bounds = array<i64: 32, 1>}, {pipeline_mode = #tpu.pipeline_mode<synchronous>, transform_indices = @transform_5, window_bounds = array<i64: 1, 16>}, {pipeline_mode = #tpu.pipeline_mode<synchronous>, transform_indices = @transform_6, window_bounds = array<i64: 16, 1>}, {transform_indices = @transform_7, window_bounds = array<i64: 16, 256>}]} {
    %c0 = arith.constant 0 : index
    %c0_0 = arith.constant 0 : index
    %0 = vector.load %arg1[%c0, %c0_0] : memref<16x256xf32, #tpu.memory_space<vmem>>, vector<16x256xf32>
    %1 = tpu.iota {dimensions = array<i32: 1>} : vector<1x256xi32>
    %c128_i32 = arith.constant 128 : i32
    %c0_i32 = arith.constant 0 : i32
    %2 = arith.cmpi eq, %c128_i32, %c0_i32 : i32
    %c1_i32 = arith.constant 1 : i32
    %3 = arith.select %2, %c1_i32, %c128_i32 : i32
    %4 = vector.broadcast %3 : i32 to vector<1x256xi32>
    %5 = arith.remsi %1, %4 : vector<1x256xi32>
    %c0_i32_1 = arith.constant 0 : i32
    %6 = vector.broadcast %c0_i32_1 : i32 to vector<1x256xi32>
    %7 = arith.cmpi ne, %5, %6 : vector<1x256xi32>
    %c0_i32_2 = arith.constant 0 : i32
    %8 = vector.broadcast %c0_i32_2 : i32 to vector<1x256xi32>
    %9 = arith.cmpi slt, %5, %8 : vector<1x256xi32>
    %c0_i32_3 = arith.constant 0 : i32
    %10 = arith.cmpi slt, %3, %c0_i32_3 : i32
    %11 = vector.broadcast %10 : i1 to vector<1x256xi1>
    %12 = vector.broadcast %11 : vector<1x256xi1> to vector<1x256xi1>
    %13 = arith.xori %9, %12 : vector<1x256xi1>
    %14 = arith.andi %13, %7 : vector<1x256xi1>
    %15 = vector.broadcast %3 : i32 to vector<1x256xi32>
    %16 = arith.addi %5, %15 : vector<1x256xi32>
    %17 = arith.select %14, %16, %5 : vector<1x256xi1>, vector<1x256xi32>
    %c0_4 = arith.constant 0 : index
    %c0_5 = arith.constant 0 : index
    %18 = vector.load %arg5[%c0_4, %c0_5] : memref<32x1xf32, #tpu.memory_space<vmem>>, vector<4x1xf32>
    %c8 = arith.constant 8 : index
    %c0_6 = arith.constant 0 : index
    %19 = vector.load %arg5[%c8, %c0_6] : memref<32x1xf32, #tpu.memory_space<vmem>>, vector<4x1xf32>
    %c16 = arith.constant 16 : index
    %c0_7 = arith.constant 0 : index
    %20 = vector.load %arg5[%c16, %c0_7] : memref<32x1xf32, #tpu.memory_space<vmem>>, vector<16x1xf32>
    %c3_i32 = arith.constant 3 : i32
    %21 = tpu.dynamic_rotate %0 by %c3_i32 dim 1 : vector<16x256xf32>, i32 -> vector<16x256xf32>
    %c3_i32_8 = arith.constant 3 : i32
    %22 = vector.broadcast %c3_i32_8 : i32 to vector<1x256xi32>
    %23 = arith.cmpi sge, %17, %22 : vector<1x256xi32>
    %cst = arith.constant 0.000000e+00 : f32
    %24 = vector.shape_cast %23 : vector<1x256xi1> to vector<1x256xi1>
    %25 = vector.broadcast %24 : vector<1x256xi1> to vector<16x256xi1>
    %26 = vector.broadcast %cst : f32 to vector<16x256xf32>
    %27 = arith.select %25, %21, %26 : vector<16x256xi1>, vector<16x256xf32>
    %c2_i32 = arith.constant 2 : i32
    %28 = tpu.dynamic_rotate %0 by %c2_i32 dim 1 : vector<16x256xf32>, i32 -> vector<16x256xf32>
    %c2_i32_9 = arith.constant 2 : i32
    %29 = vector.broadcast %c2_i32_9 : i32 to vector<1x256xi32>
    %30 = arith.cmpi sge, %17, %29 : vector<1x256xi32>
    %cst_10 = arith.constant 0.000000e+00 : f32
    %31 = vector.shape_cast %30 : vector<1x256xi1> to vector<1x256xi1>
    %32 = vector.broadcast %31 : vector<1x256xi1> to vector<16x256xi1>
    %33 = vector.broadcast %cst_10 : f32 to vector<16x256xf32>
    %34 = arith.select %32, %28, %33 : vector<16x256xi1>, vector<16x256xf32>
    %c1_i32_11 = arith.constant 1 : i32
    %35 = tpu.dynamic_rotate %0 by %c1_i32_11 dim 1 : vector<16x256xf32>, i32 -> vector<16x256xf32>
    %c1_i32_12 = arith.constant 1 : i32
    %36 = vector.broadcast %c1_i32_12 : i32 to vector<1x256xi32>
    %37 = arith.cmpi sge, %17, %36 : vector<1x256xi32>
    %cst_13 = arith.constant 0.000000e+00 : f32
    %38 = vector.shape_cast %37 : vector<1x256xi1> to vector<1x256xi1>
    %39 = vector.broadcast %38 : vector<1x256xi1> to vector<16x256xi1>
    %40 = vector.broadcast %cst_13 : f32 to vector<16x256xf32>
    %41 = arith.select %39, %35, %40 : vector<16x256xi1>, vector<16x256xf32>
    %c255_i32 = arith.constant 255 : i32
    %42 = tpu.dynamic_rotate %0 by %c255_i32 dim 1 : vector<16x256xf32>, i32 -> vector<16x256xf32>
    %c127_i32 = arith.constant 127 : i32
    %43 = vector.broadcast %c127_i32 : i32 to vector<1x256xi32>
    %44 = arith.cmpi slt, %17, %43 : vector<1x256xi32>
    %cst_14 = arith.constant 0.000000e+00 : f32
    %45 = vector.shape_cast %44 : vector<1x256xi1> to vector<1x256xi1>
    %46 = vector.broadcast %45 : vector<1x256xi1> to vector<16x256xi1>
    %47 = vector.broadcast %cst_14 : f32 to vector<16x256xf32>
    %48 = arith.select %46, %42, %47 : vector<16x256xi1>, vector<16x256xf32>
    %c254_i32 = arith.constant 254 : i32
    %49 = tpu.dynamic_rotate %0 by %c254_i32 dim 1 : vector<16x256xf32>, i32 -> vector<16x256xf32>
    %c126_i32 = arith.constant 126 : i32
    %50 = vector.broadcast %c126_i32 : i32 to vector<1x256xi32>
    %51 = arith.cmpi slt, %17, %50 : vector<1x256xi32>
    %cst_15 = arith.constant 0.000000e+00 : f32
    %52 = vector.shape_cast %51 : vector<1x256xi1> to vector<1x256xi1>
    %53 = vector.broadcast %52 : vector<1x256xi1> to vector<16x256xi1>
    %54 = vector.broadcast %cst_15 : f32 to vector<16x256xf32>
    %55 = arith.select %53, %49, %54 : vector<16x256xi1>, vector<16x256xf32>
    %c253_i32 = arith.constant 253 : i32
    %56 = tpu.dynamic_rotate %0 by %c253_i32 dim 1 : vector<16x256xf32>, i32 -> vector<16x256xf32>
    %c125_i32 = arith.constant 125 : i32
    %57 = vector.broadcast %c125_i32 : i32 to vector<1x256xi32>
    %58 = arith.cmpi slt, %17, %57 : vector<1x256xi32>
    %cst_16 = arith.constant 0.000000e+00 : f32
    %59 = vector.shape_cast %58 : vector<1x256xi1> to vector<1x256xi1>
    %60 = vector.broadcast %59 : vector<1x256xi1> to vector<16x256xi1>
    %61 = vector.broadcast %cst_16 : f32 to vector<16x256xf32>
    %62 = arith.select %60, %56, %61 : vector<16x256xi1>, vector<16x256xf32>
    %63 = tpu.concatenate %27, %34, %41, %0, %48, %55, %62 in 0 : vector<16x256xf32>, vector<16x256xf32>, vector<16x256xf32>, vector<16x256xf32>, vector<16x256xf32>, vector<16x256xf32>, vector<16x256xf32> -> vector<112x256xf32>
    %c0_17 = arith.constant 0 : index
    %c0_18 = arith.constant 0 : index
    %64 = vector.load %arg2[%c0_17, %c0_18] : memref<4x112xf32, #tpu.memory_space<vmem>>, vector<4x112xf32>
    %cst_19 = arith.constant dense<0.000000e+00> : vector<4x256xf32>
    %65 = tpu.matmul %64, %63, %cst_19 {dimension_numbers = #tpu.dot_dimension_numbers<[1], [0], [0], [1], [0, 0, 1, 1], [], []>} : vector<4x112xf32>, vector<112x256xf32>, vector<4x256xf32> -> vector<4x256xf32>
    %66 = vector.broadcast %18 : vector<4x1xf32> to vector<4x256xf32>
    %67 = arith.addf %65, %66 : vector<4x256xf32>
    %cst_20 = arith.constant 0.000000e+00 : f32
    %68 = vector.broadcast %cst_20 : f32 to vector<4x256xf32>
    %69 = arith.maximumf %67, %68 : vector<4x256xf32>
    %c5_i32 = arith.constant 5 : i32
    %70 = tpu.dynamic_rotate %69 by %c5_i32 dim 1 : vector<4x256xf32>, i32 -> vector<4x256xf32>
    %c5_i32_21 = arith.constant 5 : i32
    %71 = vector.broadcast %c5_i32_21 : i32 to vector<1x256xi32>
    %72 = arith.cmpi sge, %17, %71 : vector<1x256xi32>
    %cst_22 = arith.constant 0.000000e+00 : f32
    %73 = vector.shape_cast %72 : vector<1x256xi1> to vector<1x256xi1>
    %74 = vector.broadcast %73 : vector<1x256xi1> to vector<4x256xi1>
    %75 = vector.broadcast %cst_22 : f32 to vector<4x256xf32>
    %76 = arith.select %74, %70, %75 : vector<4x256xi1>, vector<4x256xf32>
    %c4_i32 = arith.constant 4 : i32
    %77 = tpu.dynamic_rotate %69 by %c4_i32 dim 1 : vector<4x256xf32>, i32 -> vector<4x256xf32>
    %c4_i32_23 = arith.constant 4 : i32
    %78 = vector.broadcast %c4_i32_23 : i32 to vector<1x256xi32>
    %79 = arith.cmpi sge, %17, %78 : vector<1x256xi32>
    %cst_24 = arith.constant 0.000000e+00 : f32
    %80 = vector.shape_cast %79 : vector<1x256xi1> to vector<1x256xi1>
    %81 = vector.broadcast %80 : vector<1x256xi1> to vector<4x256xi1>
    %82 = vector.broadcast %cst_24 : f32 to vector<4x256xf32>
    %83 = arith.select %81, %77, %82 : vector<4x256xi1>, vector<4x256xf32>
    %c3_i32_25 = arith.constant 3 : i32
    %84 = tpu.dynamic_rotate %69 by %c3_i32_25 dim 1 : vector<4x256xf32>, i32 -> vector<4x256xf32>
    %cst_26 = arith.constant 0.000000e+00 : f32
    %85 = vector.shape_cast %23 : vector<1x256xi1> to vector<1x256xi1>
    %86 = vector.broadcast %85 : vector<1x256xi1> to vector<4x256xi1>
    %87 = vector.broadcast %cst_26 : f32 to vector<4x256xf32>
    %88 = arith.select %86, %84, %87 : vector<4x256xi1>, vector<4x256xf32>
    %c2_i32_27 = arith.constant 2 : i32
    %89 = tpu.dynamic_rotate %69 by %c2_i32_27 dim 1 : vector<4x256xf32>, i32 -> vector<4x256xf32>
    %cst_28 = arith.constant 0.000000e+00 : f32
    %90 = vector.shape_cast %30 : vector<1x256xi1> to vector<1x256xi1>
    %91 = vector.broadcast %90 : vector<1x256xi1> to vector<4x256xi1>
    %92 = vector.broadcast %cst_28 : f32 to vector<4x256xf32>
    %93 = arith.select %91, %89, %92 : vector<4x256xi1>, vector<4x256xf32>
    %c1_i32_29 = arith.constant 1 : i32
    %94 = tpu.dynamic_rotate %69 by %c1_i32_29 dim 1 : vector<4x256xf32>, i32 -> vector<4x256xf32>
    %cst_30 = arith.constant 0.000000e+00 : f32
    %95 = vector.shape_cast %37 : vector<1x256xi1> to vector<1x256xi1>
    %96 = vector.broadcast %95 : vector<1x256xi1> to vector<4x256xi1>
    %97 = vector.broadcast %cst_30 : f32 to vector<4x256xf32>
    %98 = arith.select %96, %94, %97 : vector<4x256xi1>, vector<4x256xf32>
    %c255_i32_31 = arith.constant 255 : i32
    %99 = tpu.dynamic_rotate %69 by %c255_i32_31 dim 1 : vector<4x256xf32>, i32 -> vector<4x256xf32>
    %cst_32 = arith.constant 0.000000e+00 : f32
    %100 = vector.shape_cast %44 : vector<1x256xi1> to vector<1x256xi1>
    %101 = vector.broadcast %100 : vector<1x256xi1> to vector<4x256xi1>
    %102 = vector.broadcast %cst_32 : f32 to vector<4x256xf32>
    %103 = arith.select %101, %99, %102 : vector<4x256xi1>, vector<4x256xf32>
    %c254_i32_33 = arith.constant 254 : i32
    %104 = tpu.dynamic_rotate %69 by %c254_i32_33 dim 1 : vector<4x256xf32>, i32 -> vector<4x256xf32>
    %cst_34 = arith.constant 0.000000e+00 : f32
    %105 = vector.shape_cast %51 : vector<1x256xi1> to vector<1x256xi1>
    %106 = vector.broadcast %105 : vector<1x256xi1> to vector<4x256xi1>
    %107 = vector.broadcast %cst_34 : f32 to vector<4x256xf32>
    %108 = arith.select %106, %104, %107 : vector<4x256xi1>, vector<4x256xf32>
    %c253_i32_35 = arith.constant 253 : i32
    %109 = tpu.dynamic_rotate %69 by %c253_i32_35 dim 1 : vector<4x256xf32>, i32 -> vector<4x256xf32>
    %cst_36 = arith.constant 0.000000e+00 : f32
    %110 = vector.shape_cast %58 : vector<1x256xi1> to vector<1x256xi1>
    %111 = vector.broadcast %110 : vector<1x256xi1> to vector<4x256xi1>
    %112 = vector.broadcast %cst_36 : f32 to vector<4x256xf32>
    %113 = arith.select %111, %109, %112 : vector<4x256xi1>, vector<4x256xf32>
    %c252_i32 = arith.constant 252 : i32
    %114 = tpu.dynamic_rotate %69 by %c252_i32 dim 1 : vector<4x256xf32>, i32 -> vector<4x256xf32>
    %c124_i32 = arith.constant 124 : i32
    %115 = vector.broadcast %c124_i32 : i32 to vector<1x256xi32>
    %116 = arith.cmpi slt, %17, %115 : vector<1x256xi32>
    %cst_37 = arith.constant 0.000000e+00 : f32
    %117 = vector.shape_cast %116 : vector<1x256xi1> to vector<1x256xi1>
    %118 = vector.broadcast %117 : vector<1x256xi1> to vector<4x256xi1>
    %119 = vector.broadcast %cst_37 : f32 to vector<4x256xf32>
    %120 = arith.select %118, %114, %119 : vector<4x256xi1>, vector<4x256xf32>
    %c251_i32 = arith.constant 251 : i32
    %121 = tpu.dynamic_rotate %69 by %c251_i32 dim 1 : vector<4x256xf32>, i32 -> vector<4x256xf32>
    %c123_i32 = arith.constant 123 : i32
    %122 = vector.broadcast %c123_i32 : i32 to vector<1x256xi32>
    %123 = arith.cmpi slt, %17, %122 : vector<1x256xi32>
    %cst_38 = arith.constant 0.000000e+00 : f32
    %124 = vector.shape_cast %123 : vector<1x256xi1> to vector<1x256xi1>
    %125 = vector.broadcast %124 : vector<1x256xi1> to vector<4x256xi1>
    %126 = vector.broadcast %cst_38 : f32 to vector<4x256xf32>
    %127 = arith.select %125, %121, %126 : vector<4x256xi1>, vector<4x256xf32>
    %128 = tpu.concatenate %76, %83, %88, %93, %98, %69, %103, %108, %113, %120, %127 in 0 : vector<4x256xf32>, vector<4x256xf32>, vector<4x256xf32>, vector<4x256xf32>, vector<4x256xf32>, vector<4x256xf32>, vector<4x256xf32>, vector<4x256xf32>, vector<4x256xf32>, vector<4x256xf32>, vector<4x256xf32> -> vector<44x256xf32>
    %c0_39 = arith.constant 0 : index
    %c0_40 = arith.constant 0 : index
    %129 = vector.load %arg3[%c0_39, %c0_40] : memref<4x44xf32, #tpu.memory_space<vmem>>, vector<4x44xf32>
    %cst_41 = arith.constant dense<0.000000e+00> : vector<4x256xf32>
    %130 = tpu.matmul %129, %128, %cst_41 {dimension_numbers = #tpu.dot_dimension_numbers<[1], [0], [0], [1], [0, 0, 1, 1], [], []>} : vector<4x44xf32>, vector<44x256xf32>, vector<4x256xf32> -> vector<4x256xf32>
    %131 = vector.broadcast %19 : vector<4x1xf32> to vector<4x256xf32>
    %132 = arith.addf %130, %131 : vector<4x256xf32>
    %cst_42 = arith.constant 0.000000e+00 : f32
    %133 = vector.broadcast %cst_42 : f32 to vector<4x256xf32>
    %134 = arith.maximumf %132, %133 : vector<4x256xf32>
    %c3_i32_43 = arith.constant 3 : i32
    %135 = tpu.dynamic_rotate %134 by %c3_i32_43 dim 1 : vector<4x256xf32>, i32 -> vector<4x256xf32>
    %cst_44 = arith.constant 0.000000e+00 : f32
    %136 = vector.shape_cast %23 : vector<1x256xi1> to vector<1x256xi1>
    %137 = vector.broadcast %136 : vector<1x256xi1> to vector<4x256xi1>
    %138 = vector.broadcast %cst_44 : f32 to vector<4x256xf32>
    %139 = arith.select %137, %135, %138 : vector<4x256xi1>, vector<4x256xf32>
    %c2_i32_45 = arith.constant 2 : i32
    %140 = tpu.dynamic_rotate %134 by %c2_i32_45 dim 1 : vector<4x256xf32>, i32 -> vector<4x256xf32>
    %cst_46 = arith.constant 0.000000e+00 : f32
    %141 = vector.shape_cast %30 : vector<1x256xi1> to vector<1x256xi1>
    %142 = vector.broadcast %141 : vector<1x256xi1> to vector<4x256xi1>
    %143 = vector.broadcast %cst_46 : f32 to vector<4x256xf32>
    %144 = arith.select %142, %140, %143 : vector<4x256xi1>, vector<4x256xf32>
    %c1_i32_47 = arith.constant 1 : i32
    %145 = tpu.dynamic_rotate %134 by %c1_i32_47 dim 1 : vector<4x256xf32>, i32 -> vector<4x256xf32>
    %cst_48 = arith.constant 0.000000e+00 : f32
    %146 = vector.shape_cast %37 : vector<1x256xi1> to vector<1x256xi1>
    %147 = vector.broadcast %146 : vector<1x256xi1> to vector<4x256xi1>
    %148 = vector.broadcast %cst_48 : f32 to vector<4x256xf32>
    %149 = arith.select %147, %145, %148 : vector<4x256xi1>, vector<4x256xf32>
    %c255_i32_49 = arith.constant 255 : i32
    %150 = tpu.dynamic_rotate %134 by %c255_i32_49 dim 1 : vector<4x256xf32>, i32 -> vector<4x256xf32>
    %cst_50 = arith.constant 0.000000e+00 : f32
    %151 = vector.shape_cast %44 : vector<1x256xi1> to vector<1x256xi1>
    %152 = vector.broadcast %151 : vector<1x256xi1> to vector<4x256xi1>
    %153 = vector.broadcast %cst_50 : f32 to vector<4x256xf32>
    %154 = arith.select %152, %150, %153 : vector<4x256xi1>, vector<4x256xf32>
    %c254_i32_51 = arith.constant 254 : i32
    %155 = tpu.dynamic_rotate %134 by %c254_i32_51 dim 1 : vector<4x256xf32>, i32 -> vector<4x256xf32>
    %cst_52 = arith.constant 0.000000e+00 : f32
    %156 = vector.shape_cast %51 : vector<1x256xi1> to vector<1x256xi1>
    %157 = vector.broadcast %156 : vector<1x256xi1> to vector<4x256xi1>
    %158 = vector.broadcast %cst_52 : f32 to vector<4x256xf32>
    %159 = arith.select %157, %155, %158 : vector<4x256xi1>, vector<4x256xf32>
    %c253_i32_53 = arith.constant 253 : i32
    %160 = tpu.dynamic_rotate %134 by %c253_i32_53 dim 1 : vector<4x256xf32>, i32 -> vector<4x256xf32>
    %cst_54 = arith.constant 0.000000e+00 : f32
    %161 = vector.shape_cast %58 : vector<1x256xi1> to vector<1x256xi1>
    %162 = vector.broadcast %161 : vector<1x256xi1> to vector<4x256xi1>
    %163 = vector.broadcast %cst_54 : f32 to vector<4x256xf32>
    %164 = arith.select %162, %160, %163 : vector<4x256xi1>, vector<4x256xf32>
    %165 = tpu.concatenate %139, %144, %149, %134, %154, %159, %164 in 0 : vector<4x256xf32>, vector<4x256xf32>, vector<4x256xf32>, vector<4x256xf32>, vector<4x256xf32>, vector<4x256xf32>, vector<4x256xf32> -> vector<28x256xf32>
    %c0_55 = arith.constant 0 : index
    %c0_56 = arith.constant 0 : index
    %166 = vector.load %arg4[%c0_55, %c0_56] : memref<16x28xf32, #tpu.memory_space<vmem>>, vector<16x28xf32>
    %cst_57 = arith.constant dense<0.000000e+00> : vector<16x256xf32>
    %167 = tpu.matmul %166, %165, %cst_57 {dimension_numbers = #tpu.dot_dimension_numbers<[1], [0], [0], [1], [0, 0, 1, 1], [], []>} : vector<16x28xf32>, vector<28x256xf32>, vector<16x256xf32> -> vector<16x256xf32>
    %168 = vector.broadcast %20 : vector<16x1xf32> to vector<16x256xf32>
    %169 = arith.addf %167, %168 : vector<16x256xf32>
    %170 = vector.shape_cast %169 : vector<16x256xf32> to vector<16x2x128xf32>
    %cst_58 = arith.constant dense<0.000000e+00> : vector<16x2xf32>
    %171 = vector.multi_reduction <add>, %170, %cst_58 [2] : vector<16x2x128xf32> to vector<16x2xf32>
    %cst_59 = arith.constant 1.280000e+02 : f32
    %172 = vector.broadcast %cst_59 : f32 to vector<16x2xf32>
    %173 = arith.divf %171, %172 : vector<16x2xf32>
    %c0_60 = arith.constant 0 : index
    %c0_61 = arith.constant 0 : index
    %174 = vector.load %arg6[%c0_60, %c0_61] : memref<1x16xf32, #tpu.memory_space<vmem>>, vector<1x16xf32>
    %c0_62 = arith.constant 0 : index
    %c0_63 = arith.constant 0 : index
    %175 = vector.load %arg7[%c0_62, %c0_63] : memref<16x1xf32, #tpu.memory_space<vmem>>, vector<16x1xf32>
    %176 = vector.shape_cast %174 : vector<1x16xf32> to vector<1x16x1xf32>
    %177 = vector.shape_cast %173 : vector<16x2xf32> to vector<1x16x2xf32>
    %178 = vector.broadcast %176 : vector<1x16x1xf32> to vector<1x16x2xf32>
    %179 = arith.mulf %178, %177 : vector<1x16x2xf32>
    %cst_64 = arith.constant dense<0.000000e+00> : vector<1x2xf32>
    %180 = vector.multi_reduction <add>, %179, %cst_64 [1] : vector<1x16x2xf32> to vector<1x2xf32>
    %cst_65 = arith.constant 0.000000e+00 : f32
    %181 = vector.broadcast %cst_65 : f32 to vector<1x2xf32>
    %182 = arith.maximumf %180, %181 : vector<1x2xf32>
    %183 = vector.shape_cast %175 : vector<16x1xf32> to vector<16x1x1xf32>
    %184 = vector.shape_cast %182 : vector<1x2xf32> to vector<1x1x2xf32>
    %185 = vector.broadcast %183 : vector<16x1x1xf32> to vector<16x1x2xf32>
    %186 = vector.broadcast %184 : vector<1x1x2xf32> to vector<16x1x2xf32>
    %187 = arith.mulf %185, %186 : vector<16x1x2xf32>
    %cst_66 = arith.constant dense<0.000000e+00> : vector<16x2xf32>
    %188 = vector.multi_reduction <add>, %187, %cst_66 [1] : vector<16x1x2xf32> to vector<16x2xf32>
    %189 = arith.negf %188 : vector<16x2xf32>
    %190 = math.exp %189 : vector<16x2xf32>
    %cst_67 = arith.constant 1.000000e+00 : f32
    %191 = vector.broadcast %cst_67 : f32 to vector<16x2xf32>
    %192 = arith.addf %191, %190 : vector<16x2xf32>
    %193 = arith.divf %191, %192 : vector<16x2xf32>
    %194 = vector.shape_cast %193 : vector<16x2xf32> to vector<16x2x1xf32>
    %195 = vector.broadcast %194 : vector<16x2x1xf32> to vector<16x2x128xf32>
    %196 = arith.mulf %195, %170 : vector<16x2x128xf32>
    %197 = vector.shape_cast %0 : vector<16x256xf32> to vector<16x2x128xf32>
    %198 = arith.addf %196, %197 : vector<16x2x128xf32>
    %cst_68 = arith.constant 0.000000e+00 : f32
    %199 = vector.broadcast %cst_68 : f32 to vector<16x2x128xf32>
    %200 = arith.maximumf %198, %199 : vector<16x2x128xf32>
    %201 = vector.shape_cast %200 : vector<16x2x128xf32> to vector<16x256xf32>
    %c0_69 = arith.constant 0 : index
    %c0_70 = arith.constant 0 : index
    %202 = vector.load %arg8[%c0_69, %c0_70] : memref<16x256xf32, #tpu.memory_space<vmem>>, vector<16x256xf32>
    tpu.vector_store %arg8[%c0_69, %c0_70], %201 {strides = array<i32>} : memref<16x256xf32, #tpu.memory_space<vmem>>, vector<16x256xf32>,
    return
  }
  func.func @transform_0(%arg0: i32) -> (i32, i32) {
    %c0_i32 = arith.constant 0 : i32
    %c0_i32_0 = arith.constant 0 : i32
    return %c0_i32, %arg0 : i32, i32
  }
  func.func @transform_1(%arg0: i32) -> (i32, i32) {
    %c0_i32 = arith.constant 0 : i32
    %c0_i32_0 = arith.constant 0 : i32
    %c0_i32_1 = arith.constant 0 : i32
    return %c0_i32, %c0_i32_0 : i32, i32
  }
  func.func @transform_2(%arg0: i32) -> (i32, i32) {
    %c0_i32 = arith.constant 0 : i32
    %c0_i32_0 = arith.constant 0 : i32
    %c0_i32_1 = arith.constant 0 : i32
    return %c0_i32, %c0_i32_0 : i32, i32
  }
  func.func @transform_3(%arg0: i32) -> (i32, i32) {
    %c0_i32 = arith.constant 0 : i32
    %c0_i32_0 = arith.constant 0 : i32
    %c0_i32_1 = arith.constant 0 : i32
    return %c0_i32, %c0_i32_0 : i32, i32
  }
  func.func @transform_4(%arg0: i32) -> (i32, i32) {
    %c0_i32 = arith.constant 0 : i32
    %c0_i32_0 = arith.constant 0 : i32
    %c0_i32_1 = arith.constant 0 : i32
    return %c0_i32, %c0_i32_0 : i32, i32
  }
  func.func @transform_5(%arg0: i32) -> (i32, i32) {
    %c0_i32 = arith.constant 0 : i32
    %c0_i32_0 = arith.constant 0 : i32
    %c0_i32_1 = arith.constant 0 : i32
    return %c0_i32, %c0_i32_0 : i32, i32
  }
  func.func @transform_6(%arg0: i32) -> (i32, i32) {
    %c0_i32 = arith.constant 0 : i32
    %c0_i32_0 = arith.constant 0 : i32
    %c0_i32_1 = arith.constant 0 : i32
    return %c0_i32, %c0_i32_0 : i32, i32
  }
  func.func @transform_7(%arg0: i32) -> (i32, i32) {
    %c0_i32 = arith.constant 0 : i32
    %c0_i32_0 = arith.constant 0 : i32
    return %c0_i32, %arg0 : i32, i32
  }
}

</mosaic_0001>

<llo_original>
// kernel: bottleneck_forward.1
$region0: #{bottleneck_forward.1}
  #allocation0 [shape = 'u32[]', space=smem, size = 0x4, offset = 0x4, fixed_abs, tag = 'smem constant byte address 0x4 - core index']
  #allocation1 [shape = 'u32[144,128]{1,0:T(1,128)}', space=vmem, size = 0x12000, scoped, tag = 'internal scratch']
  %s0 = inlined_call_operand.vmem [shape: f32[16,256], index: 0, kind: input, shape index: {}]
  %s1 = inlined_call_operand.vmem [shape: f32[4,112], index: 1, kind: input, shape index: {}]
  %s2 = inlined_call_operand.vmem [shape: f32[4,44], index: 2, kind: input, shape index: {}]
  %s3 = inlined_call_operand.vmem [shape: f32[16,28], index: 3, kind: input, shape index: {}]
  %s4 = inlined_call_operand.vmem [shape: f32[32,1], index: 4, kind: input, shape index: {}]
  %s5 = inlined_call_operand.vmem [shape: f32[1,16], index: 5, kind: input, shape index: {}]
  %s6 = inlined_call_operand.vmem [shape: f32[16,1], index: 6, kind: input, shape index: {}]
  %s7 = inlined_call_operand.vmem [shape: f32[16,256], index: 7, kind: output, shape index: {}]
  %s8 = sld [smem:[#allocation0]]
  $region38: #{bottleneck_forward.1} parent=0
    _
  %s10 = ssub.s32 1, %s8
  %s11 = scalar_select 0, %s10, %s8
  // Predicated region
  $region2: #{bottleneck_forward.1} parent=0 // pred_check
    _
  $region3: #{bottleneck_forward.1} parent=0 // pred_check_branch
    %13 = sbr.rel (0) target = $region5
  $region4: #{bottleneck_forward.1} parent=0 // pred_region
    _
  $region5: #{bottleneck_forward.1} parent=0 // pred_fallthru
    _
  // Predicated region
  $region6: #{bottleneck_forward.1} parent=0 // pred_check
    _
  $region7: #{bottleneck_forward.1} parent=0 // pred_check_branch
    %15 = sbr.rel (0) target = $region9
  $region8: #{bottleneck_forward.1} parent=0 // pred_region
    _
  $region9: #{bottleneck_forward.1} parent=0 // pred_fallthru
    _
  // Predicated region
  $region10: #{bottleneck_forward.1} parent=0 // pred_check
    _
  $region11: #{bottleneck_forward.1} parent=0 // pred_check_branch
    %17 = sbr.rel (0) target = $region13
  $region12: #{bottleneck_forward.1} parent=0 // pred_region
    _
  $region13: #{bottleneck_forward.1} parent=0 // pred_fallthru
    _
  // Predicated region
  $region14: #{bottleneck_forward.1} parent=0 // pred_check
    _
  $region15: #{bottleneck_forward.1} parent=0 // pred_check_branch
    %19 = sbr.rel (0) target = $region17
  $region16: #{bottleneck_forward.1} parent=0 // pred_region
    _
  $region17: #{bottleneck_forward.1} parent=0 // pred_fallthru
    _
  // Predicated region
  $region18: #{bottleneck_forward.1} parent=0 // pred_check
    _
  $region19: #{bottleneck_forward.1} parent=0 // pred_check_branch
    %21 = sbr.rel (0) target = $region21
  $region20: #{bottleneck_forward.1} parent=0 // pred_region
    _
  $region21: #{bottleneck_forward.1} parent=0 // pred_fallthru
    _
  // Predicated region
  $region22: #{bottleneck_forward.1} parent=0 // pred_check
    _
  $region23: #{bottleneck_forward.1} parent=0 // pred_check_branch
    %23 = sbr.rel (0) target = $region25
  $region24: #{bottleneck_forward.1} parent=0 // pred_region
    _
  $region25: #{bottleneck_forward.1} parent=0 // pred_fallthru
    _
  // Predicated region
  $region26: #{bottleneck_forward.1} parent=0 // pred_check
    _
  $region27: #{bottleneck_forward.1} parent=0 // pred_check_branch
    %25 = sbr.rel (0) target = $region29
  $region28: #{bottleneck_forward.1} parent=0 // pred_region
    _
  $region29: #{bottleneck_forward.1} parent=0 // pred_fallthru
    _
  %v26 = vld [vmem:[%s0] sm:$0xff]
  %v27 = vld [vmem:[%s0 + $0x8] sm:$0xff]
  %v28 = vld [vmem:[%s0 + $0x10] sm:$0xff]
  %v29 = vld [vmem:[%s0 + $0x18] sm:$0xff]
  %v30 = vlaneseq
  %v31 = vand.u32 %v30, 127
  %v32 = vadd.s32 %v31, 128
  %vm33 = vcmp.lt.s32.totalorder %v31, 0
  %v34 = vsub.s32 0, %v31
  %v35 = vsel %vm33, %v34, %v31
  %v36 = vshrl.u32 %v35, 7
  %v37 = vand.u32 %v35, 127
  %v38 = vsub.s32 0, %v37
  %v39 = vsel %vm33, %v38, %v37
  %vm40 = vcmp.lt.s32.totalorder %v32, 0
  %v41 = vsub.s32 0, %v32
  %v42 = vsel %vm40, %v41, %v32
  %v43 = vshrl.u32 %v42, 7
  %v44 = vand.u32 %v42, 127
  %v45 = vsub.s32 0, %v44
  %v46 = vsel %vm40, %v45, %v44
  %vm47 = vcmp.ne.s32.totalorder %v39, 0
  %vm48 = vcmp.ne.s32.totalorder %v46, 0
  %vm49 = vcmp.lt.s32.totalorder %v39, 0
  %vm50 = vcmp.lt.s32.totalorder %v46, 0
  %vm51 = vmand %vm49, %vm47
  %vm52 = vmand %vm50, %vm48
  %v53 = vadd.s32 %v39, 128
  %v54 = vadd.s32 %v46, 128
  %v55 = vsel %vm51, %v53, %v39
  %v56 = vsel %vm52, %v54, %v46
  %v57 = vld [vmem:[%s4] sm:$0xf]
  %v58 = vld [vmem:[%s4 + $0x8] sm:$0xf]
  %v59 = vld [vmem:[%s4 + $0x10] sm:$0xff]
  %v60 = vld [vmem:[%s4 + $0x18] sm:$0xff]
  %61 = vrot.lane.b32.xlu0 %v26, 3
  %v62 = vpop.permute.xlu0 %61
  %63 = vrot.lane.b32.xlu0 %v28, 3
  %v64 = vpop.permute.xlu0 %63
  %65 = vrot.lane.b32.xlu0 %v27, 3
  %v66 = vpop.permute.xlu0 %65
  %67 = vrot.lane.b32.xlu0 %v29, 3
  %v68 = vpop.permute.xlu0 %67
  %vm69 = vcmp.lt.s32.totalorder %v31, 3
  %v70 = vsel %vm69, %v62, %v66
  %v71 = vsel %vm69, %v64, %v68
  %v72 = vsel %vm69, %v66, %v62
  %v73 = vsel %vm69, %v68, %v64
  %vm74 = vcmp.ge.s32.totalorder %v55, 3
  %vm75 = vcmp.ge.s32.totalorder %v56, 3
  %v76 = vsel %vm74, 1, 0
  %v77 = vsel %vm75, 1, 0
  %vm78 = vcmp.eq.s32.totalorder %v76, 1
  %vm79 = vcmp.eq.s32.totalorder %v77, 1
  %v80 = vsel %vm78, %v72, 0.0
  %v81 = vsel %vm79, %v70, 0.0
  %v82 = vsel %vm78, %v73, 0.0
  %v83 = vsel %vm79, %v71, 0.0
  %84 = vrot.lane.b32.xlu0 %v26, 2
  %v85 = vpop.permute.xlu0 %84
  %86 = vrot.lane.b32.xlu0 %v28, 2
  %v87 = vpop.permute.xlu0 %86
  %88 = vrot.lane.b32.xlu0 %v27, 2
  %v89 = vpop.permute.xlu0 %88
  %90 = vrot.lane.b32.xlu0 %v29, 2
  %v91 = vpop.permute.xlu0 %90
  %vm92 = vcmp.lt.s32.totalorder %v31, 2
  %v93 = vsel %vm92, %v85, %v89
  %v94 = vsel %vm92, %v87, %v91
  %v95 = vsel %vm92, %v89, %v85
  %v96 = vsel %vm92, %v91, %v87
  %vm97 = vcmp.ge.s32.totalorder %v55, 2
  %vm98 = vcmp.ge.s32.totalorder %v56, 2
  %v99 = vsel %vm97, 1, 0
  %v100 = vsel %vm98, 1, 0
  %vm101 = vcmp.eq.s32.totalorder %v99, 1
  %vm102 = vcmp.eq.s32.totalorder %v100, 1
  %v103 = vsel %vm101, %v95, 0.0
  %v104 = vsel %vm102, %v93, 0.0
  %v105 = vsel %vm101, %v96, 0.0
  %v106 = vsel %vm102, %v94, 0.0
  %107 = vrot.lane.b32.xlu0 %v26, 1
  %v108 = vpop.permute.xlu0 %107
  %109 = vrot.lane.b32.xlu0 %v28, 1
  %v110 = vpop.permute.xlu0 %109
  %111 = vrot.lane.b32.xlu0 %v27, 1
  %v112 = vpop.permute.xlu0 %111
  %113 = vrot.lane.b32.xlu0 %v29, 1
  %v114 = vpop.permute.xlu0 %113
  %vm115 = vcmp.lt.s32.totalorder %v31, 1
  %v116 = vsel %vm115, %v108, %v112
  %v117 = vsel %vm115, %v110, %v114
  %v118 = vsel %vm115, %v112, %v108
  %v119 = vsel %vm115, %v114, %v110
  %vm120 = vcmp.ge.s32.totalorder %v55, 1
  %vm121 = vcmp.ge.s32.totalorder %v56, 1
  %v122 = vsel %vm120, 1, 0
  %v123 = vsel %vm121, 1, 0
  %vm124 = vcmp.eq.s32.totalorder %v122, 1
  %vm125 = vcmp.eq.s32.totalorder %v123, 1
  %v126 = vsel %vm124, %v118, 0.0
  %v127 = vsel %vm125, %v116, 0.0
  %v128 = vsel %vm124, %v119, 0.0
  %v129 = vsel %vm125, %v117, 0.0
  %130 = vrot.lane.b32.xlu0 %v26, 127
  %v131 = vpop.permute.xlu0 %130
  %132 = vrot.lane.b32.xlu0 %v28, 127
  %v133 = vpop.permute.xlu0 %132
  %134 = vrot.lane.b32.xlu0 %v27, 127
  %v135 = vpop.permute.xlu0 %134
  %136 = vrot.lane.b32.xlu0 %v29, 127
  %v137 = vpop.permute.xlu0 %136
  %vm138 = vcmp.lt.s32.totalorder %v31, 127
  %v139 = vsel %vm138, %v131, %v135
  %v140 = vsel %vm138, %v133, %v137
  %v141 = vsel %vm138, %v135, %v131
  %v142 = vsel %vm138, %v137, %v133
  %vm143 = vcmp.lt.s32.totalorder %v55, 127
  %vm144 = vcmp.lt.s32.totalorder %v56, 127
  %v145 = vsel %vm143, 1, 0
  %v146 = vsel %vm144, 1, 0
  %vm147 = vcmp.eq.s32.totalorder %v145, 1
  %vm148 = vcmp.eq.s32.totalorder %v146, 1
  %v149 = vsel %vm147, %v139, 0.0
  %v150 = vsel %vm148, %v141, 0.0
  %v151 = vsel %vm147, %v140, 0.0
  %v152 = vsel %vm148, %v142, 0.0
  %153 = vrot.lane.b32.xlu0 %v26, 126
  %v154 = vpop.permute.xlu0 %153
  %155 = vrot.lane.b32.xlu0 %v28, 126
  %v156 = vpop.permute.xlu0 %155
  %157 = vrot.lane.b32.xlu0 %v27, 126
  %v158 = vpop.permute.xlu0 %157
  %159 = vrot.lane.b32.xlu0 %v29, 126
  %v160 = vpop.permute.xlu0 %159
  %vm161 = vcmp.lt.s32.totalorder %v31, 126
  %v162 = vsel %vm161, %v154, %v158
  %v163 = vsel %vm161, %v156, %v160
  %v164 = vsel %vm161, %v158, %v154
  %v165 = vsel %vm161, %v160, %v156
  %vm166 = vcmp.lt.s32.totalorder %v55, 126
  %vm167 = vcmp.lt.s32.totalorder %v56, 126
  %v168 = vsel %vm166, 1, 0
  %v169 = vsel %vm167, 1, 0
  %vm170 = vcmp.eq.s32.totalorder %v168, 1
  %vm171 = vcmp.eq.s32.totalorder %v169, 1
  %v172 = vsel %vm170, %v162, 0.0
  %v173 = vsel %vm171, %v164, 0.0
  %v174 = vsel %vm170, %v163, 0.0
  %v175 = vsel %vm171, %v165, 0.0
  %176 = vrot.lane.b32.xlu0 %v26, 125
  %v177 = vpop.permute.xlu0 %176
  %178 = vrot.lane.b32.xlu0 %v28, 125
  %v179 = vpop.permute.xlu0 %178
  %180 = vrot.lane.b32.xlu0 %v27, 125
  %v181 = vpop.permute.xlu0 %180
  %182 = vrot.lane.b32.xlu0 %v29, 125
  %v183 = vpop.permute.xlu0 %182
  %vm184 = vcmp.lt.s32.totalorder %v31, 125
  %v185 = vsel %vm184, %v177, %v181
  %v186 = vsel %vm184, %v179, %v183
  %v187 = vsel %vm184, %v181, %v177
  %v188 = vsel %vm184, %v183, %v179
  %vm189 = vcmp.lt.s32.totalorder %v55, 125
  %vm190 = vcmp.lt.s32.totalorder %v56, 125
  %v191 = vsel %vm189, 1, 0
  %v192 = vsel %vm190, 1, 0
  %vm193 = vcmp.eq.s32.totalorder %v191, 1
  %vm194 = vcmp.eq.s32.totalorder %v192, 1
  %v195 = vsel %vm193, %v185, 0.0
  %v196 = vsel %vm194, %v187, 0.0
  %v197 = vsel %vm193, %v186, 0.0
  %v198 = vsel %vm194, %v188, 0.0
  %v199 = vld [vmem:[%s1] sm:$0xf]
  %201 = vset.pattern.permute.xlu0 0
  %202 = vperm.xlu0 %201, %v57
  %v203 = vpop.permute.xlu0 %202
  %vm205 = vcmask 916480
  %v207 = vsel %vm205, %v199, 0
  %209 = vmatprep.subr.mxu0 0.0
  %210 = vmatpush1.msra.mxu0 0.0
  %211 = vmatprep.subr.mxu0 0.0
  %212 = vmatpush1.msra.mxu0 0.0
  %213 = vmatprep.subr.mxu0 %v198
  %214 = vmatpush1.msra.mxu0 %v197
  %215 = vmatprep.subr.mxu0 %v196
  %216 = vmatpush1.msra.mxu0 %v195
  %217 = vmatprep.subr.mxu0 %v175
  %218 = vmatpush1.msra.mxu0 %v174
  %219 = vmatprep.subr.mxu0 %v173
  %220 = vmatpush1.msra.mxu0 %v172
  %221 = vmatprep.subr.mxu0 %v152
  %222 = vmatpush1.msra.mxu0 %v151
  %223 = vmatprep.subr.mxu0 %v150
  %224 = vmatpush1.msra.mxu0 %v149
  %225 = vmatprep.subr.mxu0 %v29
  %226 = vmatpush1.msra.mxu0 %v28
  %227 = vmatprep.subr.mxu0 %v27
  %228 = vmatpush1.msra.mxu0 %v26
  %229 = vmatprep.subr.mxu0 %v129
  %230 = vmatpush1.msra.mxu0 %v128
  %231 = vmatprep.subr.mxu0 %v127
  %232 = vmatpush1.msra.mxu0 %v126
  %233 = vmatprep.subr.mxu0 %v106
  %234 = vmatpush1.msra.mxu0 %v105
  %235 = vmatprep.subr.mxu0 %v104
  %236 = vmatpush1.msra.mxu0 %v103
  %237 = vmatprep.subr.mxu0 %v83
  %238 = vmatpush1.msra.mxu0 %v82
  %239 = vmatprep.subr.mxu0 %v81
  %240 = vmatpush1.msra.mxu0 %v80
  %241 = vmatprep.subr.mxu0 0.0
  %242 = vmatpush2.msra.mxu0 0.0
  %243 = vmatprep.subr.mxu0 0.0
  %244 = vmatpush2.msra.mxu0 0.0
  %245 = vmatprep.subr.mxu0 0.0
  %246 = vmatpush2.msra.mxu0 0.0
  %247 = vmatprep.subr.mxu0 0.0
  %248 = vmatpush2.msra.mxu0 0.0
  %249 = vmatprep.subr.mxu0 0.0
  %250 = vmatpush2.msra.mxu0 0.0
  %251 = vmatprep.subr.mxu0 0.0
  %252 = vmatpush2.msra.mxu0 0.0
  %253 = vmatprep.subr.mxu0 0.0
  %254 = vmatpush2.msra.mxu0 0.0
  %255 = vmatprep.subr.mxu0 0.0
  %256 = vmatpush2.msra.mxu0 0.0
  %257 = vmatprep.subr.mxu0 0.0
  %258 = vmatpush2.msra.mxu0 0.0
  %259 = vmatprep.subr.mxu0 0.0
  %260 = vmatpush2.msra.mxu0 0.0
  %261 = vmatprep.subr.mxu0 0.0
  %262 = vmatpush2.msra.mxu0 0.0
  %263 = vmatprep.subr.mxu0 0.0
  %264 = vmatpush2.msra.mxu0 0.0
  %265 = vmatprep.subr.mxu0 0.0
  %266 = vmatpush2.msra.mxu0 0.0
  %267 = vmatprep.subr.mxu0 0.0
  %268 = vmatpush2.msra.mxu0 0.0
  %269 = vmatprep.subr.mxu0 0.0
  %270 = vmatpush2.msra.mxu0 0.0
  %271 = vmatprep.subr.mxu0 0.0
  %272 = vmatpush2.msra.mxu0 0.0
  %273 = vmatprep.mubr.f32.mxu0 0.0
  %274 = vmatmul.mubr.f32.gmra.mxu0 %v207
  %v275 = vpop.f32.mrf.mxu0
  %v276 = vadd.f32 %v203, %v275
  %v277 = vpop.f32.mrf.mxu0
  %v278 = vadd.f32 %v203, %v277
  %279 = vdwg.mxu0
  %v280 = vmax.f32 %v276, 0.0
  %v281 = vmax.f32 %v278, 0.0
  %282 = vrot.lane.b32.xlu0 %v280, 5
  %v283 = vpop.permute.xlu0 %282
  %284 = vrot.lane.b32.xlu0 %v281, 5
  %v285 = vpop.permute.xlu0 %284
  %vm286 = vcmp.lt.s32.totalorder %v31, 5
  %v287 = vsel %vm286, %v283, %v285
  %v288 = vsel %vm286, %v285, %v283
  %vm289 = vcmp.ge.s32.totalorder %v55, 5
  %vm290 = vcmp.ge.s32.totalorder %v56, 5
  %v291 = vsel %vm289, 1, 0
  %v292 = vsel %vm290, 1, 0
  %vm293 = vcmp.eq.s32.totalorder %v291, 1
  %vm294 = vcmp.eq.s32.totalorder %v292, 1
  %v295 = vsel %vm293, %v288, 0.0
  %v296 = vsel %vm294, %v287, 0.0
  %297 = vrot.lane.b32.xlu0 %v280, 4
  %v298 = vpop.permute.xlu0 %297
  %299 = vrot.lane.b32.xlu0 %v281, 4
  %v300 = vpop.permute.xlu0 %299
  %vm301 = vcmp.lt.s32.totalorder %v31, 4
  %v302 = vsel %vm301, %v298, %v300
  %v303 = vsel %vm301, %v300, %v298
  %vm304 = vcmp.ge.s32.totalorder %v55, 4
  %vm305 = vcmp.ge.s32.totalorder %v56, 4
  %v306 = vsel %vm304, 1, 0
  %v307 = vsel %vm305, 1, 0
  %vm308 = vcmp.eq.s32.totalorder %v306, 1
  %vm309 = vcmp.eq.s32.totalorder %v307, 1
  %v310 = vsel %vm308, %v303, 0.0
  %v311 = vsel %vm309, %v302, 0.0
  %312 = vrot.lane.b32.xlu0 %v280, 3
  %v313 = vpop.permute.xlu0 %312
  %314 = vrot.lane.b32.xlu0 %v281, 3
  %v315 = vpop.permute.xlu0 %314
  %v316 = vsel %vm69, %v313, %v315
  %v317 = vsel %vm69, %v315, %v313
  %v318 = vsel %vm78, %v317, 0.0
  %v319 = vsel %vm79, %v316, 0.0
  %320 = vrot.lane.b32.xlu0 %v280, 2
  %v321 = vpop.permute.xlu0 %320
  %322 = vrot.lane.b32.xlu0 %v281, 2
  %v323 = vpop.permute.xlu0 %322
  %v324 = vsel %vm92, %v321, %v323
  %v325 = vsel %vm92, %v323, %v321
  %v326 = vsel %vm101, %v325, 0.0
  %v327 = vsel %vm102, %v324, 0.0
  %328 = vrot.lane.b32.xlu0 %v280, 1
  %v329 = vpop.permute.xlu0 %328
  %330 = vrot.lane.b32.xlu0 %v281, 1
  %v331 = vpop.permute.xlu0 %330
  %v332 = vsel %vm115, %v329, %v331
  %v333 = vsel %vm115, %v331, %v329
  %v334 = vsel %vm124, %v333, 0.0
  %v335 = vsel %vm125, %v332, 0.0
  %336 = vrot.lane.b32.xlu0 %v280, 127
  %v337 = vpop.permute.xlu0 %336
  %338 = vrot.lane.b32.xlu0 %v281, 127
  %v339 = vpop.permute.xlu0 %338
  %v340 = vsel %vm138, %v337, %v339
  %v341 = vsel %vm138, %v339, %v337
  %v342 = vsel %vm147, %v340, 0.0
  %v343 = vsel %vm148, %v341, 0.0
  %344 = vrot.lane.b32.xlu0 %v280, 126
  %v345 = vpop.permute.xlu0 %344
  %346 = vrot.lane.b32.xlu0 %v281, 126
  %v347 = vpop.permute.xlu0 %346
  %v348 = vsel %vm161, %v345, %v347
  %v349 = vsel %vm161, %v347, %v345
  %v350 = vsel %vm170, %v348, 0.0
  %v351 = vsel %vm171, %v349, 0.0
  %352 = vrot.lane.b32.xlu0 %v280, 125
  %v353 = vpop.permute.xlu0 %352
  %354 = vrot.lane.b32.xlu0 %v281, 125
  %v355 = vpop.permute.xlu0 %354
  %v356 = vsel %vm184, %v353, %v355
  %v357 = vsel %vm184, %v355, %v353
  %v358 = vsel %vm193, %v356, 0.0
  %v359 = vsel %vm194, %v357, 0.0
  %360 = vrot.lane.b32.xlu0 %v280, 124
  %v361 = vpop.permute.xlu0 %360
  %362 = vrot.lane.b32.xlu0 %v281, 124
  %v363 = vpop.permute.xlu0 %362
  %vm364 = vcmp.lt.s32.totalorder %v31, 124
  %v365 = vsel %vm364, %v361, %v363
  %v366 = vsel %vm364, %v363, %v361
  %vm367 = vcmp.lt.s32.totalorder %v55, 124
  %vm368 = vcmp.lt.s32.totalorder %v56, 124
  %v369 = vsel %vm367, 1, 0
  %v370 = vsel %vm368, 1, 0
  %vm371 = vcmp.eq.s32.totalorder %v369, 1
  %vm372 = vcmp.eq.s32.totalorder %v370, 1
  %v373 = vsel %vm371, %v365, 0.0
  %v374 = vsel %vm372, %v366, 0.0
  %375 = vrot.lane.b32.xlu0 %v280, 123
  %v376 = vpop.permute.xlu0 %375
  %377 = vrot.lane.b32.xlu0 %v281, 123
  %v378 = vpop.permute.xlu0 %377
  %vm379 = vcmp.lt.s32.totalorder %v31, 123
  %v380 = vsel %vm379, %v376, %v378
  %v381 = vsel %vm379, %v378, %v376
  %vm382 = vcmp.lt.s32.totalorder %v55, 123
  %vm383 = vcmp.lt.s32.totalorder %v56, 123
  %v384 = vsel %vm382, 1, 0
  %v385 = vsel %vm383, 1, 0
  %vm386 = vcmp.eq.s32.totalorder %v384, 1
  %vm387 = vcmp.eq.s32.totalorder %v385, 1
  %v388 = vsel %vm386, %v380, 0.0
  %v389 = vsel %vm387, %v381, 0.0
  %v392 = vrot.slane %v310, 4
  %v393 = vrot.slane %v311, 4
  %v398 = vrot.slane %v326, 4
  %v399 = vrot.slane %v327, 4
  %v404 = vrot.slane %v280, 4
  %v405 = vrot.slane %v281, 4
  %v410 = vrot.slane %v350, 4
  %v411 = vrot.slane %v351, 4
  %v416 = vrot.slane %v373, 4
  %v417 = vrot.slane %v374, 4
  %vm420 = vcmask 1043456
  %v421 = vsel %vm420, %v295, %v392
  %v422 = vsel %vm420, %v296, %v393
  %v423 = vsel %vm420, %v318, %v398
  %v424 = vsel %vm420, %v319, %v399
  %v425 = vsel %vm420, %v334, %v404
  %v426 = vsel %vm420, %v335, %v405
  %v427 = vsel %vm420, %v342, %v410
  %v428 = vsel %vm420, %v343, %v411
  %v429 = vsel %vm420, %v358, %v416
  %v430 = vsel %vm420, %v359, %v417
  %v431 = vld [vmem:[%s2] sm:$0xf]
  %433 = vset.pattern.permute.xlu0 0
  %434 = vperm.xlu0 %433, %v58
  %v435 = vpop.permute.xlu0 %434
  %vm437 = vcmask 359424
  %v439 = vsel %vm437, %v431, 0
  %v442 = vsel %vm420, %v388, 0
  %v445 = vsel %vm420, %v389, 0
  %447 = vmatprep.subr.mxu0 0.0
  %448 = vmatpush1.msra.mxu0 0.0
  %449 = vmatprep.subr.mxu0 0.0
  %450 = vmatpush1.msra.mxu0 0.0
  %451 = vmatprep.subr.mxu0 0.0
  %452 = vmatpush1.msra.mxu0 0.0
  %453 = vmatprep.subr.mxu0 0.0
  %454 = vmatpush1.msra.mxu0 0.0
  %455 = vmatprep.subr.mxu0 0.0
  %456 = vmatpush1.msra.mxu0 0.0
  %457 = vmatprep.subr.mxu0 0.0
  %458 = vmatpush1.msra.mxu0 0.0
  %459 = vmatprep.subr.mxu0 0.0
  %460 = vmatpush1.msra.mxu0 0.0
  %461 = vmatprep.subr.mxu0 0.0
  %462 = vmatpush1.msra.mxu0 0.0
  %463 = vmatprep.subr.mxu0 0.0
  %464 = vmatpush1.msra.mxu0 0.0
  %465 = vmatprep.subr.mxu0 0.0
  %466 = vmatpush1.msra.mxu0 0.0
  %467 = vmatprep.subr.mxu0 %v445
  %468 = vmatpush1.msra.mxu0 %v442
  %469 = vmatprep.subr.mxu0 %v430
  %470 = vmatpush1.msra.mxu0 %v429
  %471 = vmatprep.subr.mxu0 %v428
  %472 = vmatpush1.msra.mxu0 %v427
  %473 = vmatprep.subr.mxu0 %v426
  %474 = vmatpush1.msra.mxu0 %v425
  %475 = vmatprep.subr.mxu0 %v424
  %476 = vmatpush1.msra.mxu0 %v423
  %477 = vmatprep.subr.mxu0 %v422
  %478 = vmatpush1.msra.mxu0 %v421
  %479 = vmatprep.subr.mxu0 0.0
  %480 = vmatpush2.msra.mxu0 0.0
  %481 = vmatprep.subr.mxu0 0.0
  %482 = vmatpush2.msra.mxu0 0.0
  %483 = vmatprep.subr.mxu0 0.0
  %484 = vmatpush2.msra.mxu0 0.0
  %485 = vmatprep.subr.mxu0 0.0
  %486 = vmatpush2.msra.mxu0 0.0
  %487 = vmatprep.subr.mxu0 0.0
  %488 = vmatpush2.msra.mxu0 0.0
  %489 = vmatprep.subr.mxu0 0.0
  %490 = vmatpush2.msra.mxu0 0.0
  %491 = vmatprep.subr.mxu0 0.0
  %492 = vmatpush2.msra.mxu0 0.0
  %493 = vmatprep.subr.mxu0 0.0
  %494 = vmatpush2.msra.mxu0 0.0
  %495 = vmatprep.subr.mxu0 0.0
  %496 = vmatpush2.msra.mxu0 0.0
  %497 = vmatprep.subr.mxu0 0.0
  %498 = vmatpush2.msra.mxu0 0.0
  %499 = vmatprep.subr.mxu0 0.0
  %500 = vmatpush2.msra.mxu0 0.0
  %501 = vmatprep.subr.mxu0 0.0
  %502 = vmatpush2.msra.mxu0 0.0
  %503 = vmatprep.subr.mxu0 0.0
  %504 = vmatpush2.msra.mxu0 0.0
  %505 = vmatprep.subr.mxu0 0.0
  %506 = vmatpush2.msra.mxu0 0.0
  %507 = vmatprep.subr.mxu0 0.0
  %508 = vmatpush2.msra.mxu0 0.0
  %509 = vmatprep.subr.mxu0 0.0
  %510 = vmatpush2.msra.mxu0 0.0
  %511 = vmatprep.mubr.f32.mxu0 0.0
  %512 = vmatmul.mubr.f32.gmra.mxu0 %v439
  %v513 = vpop.f32.mrf.mxu0
  %v514 = vadd.f32 %v435, %v513
  %v515 = vpop.f32.mrf.mxu0
  %v516 = vadd.f32 %v435, %v515
  %517 = vdwg.mxu0
  %v518 = vmax.f32 %v514, 0.0
  %v519 = vmax.f32 %v516, 0.0
  %520 = vrot.lane.b32.xlu0 %v518, 3
  %v521 = vpop.permute.xlu0 %520
  %522 = vrot.lane.b32.xlu0 %v519, 3
  %v523 = vpop.permute.xlu0 %522
  %v524 = vsel %vm69, %v521, %v523
  %v525 = vsel %vm69, %v523, %v521
  %v526 = vsel %vm78, %v525, 0.0
  %v527 = vsel %vm79, %v524, 0.0
  %528 = vrot.lane.b32.xlu0 %v518, 2
  %v529 = vpop.permute.xlu0 %528
  %530 = vrot.lane.b32.xlu0 %v519, 2
  %v531 = vpop.permute.xlu0 %530
  %v532 = vsel %vm92, %v529, %v531
  %v533 = vsel %vm92, %v531, %v529
  %v534 = vsel %vm101, %v533, 0.0
  %v535 = vsel %vm102, %v532, 0.0
  %536 = vrot.lane.b32.xlu0 %v518, 1
  %v537 = vpop.permute.xlu0 %536
  %538 = vrot.lane.b32.xlu0 %v519, 1
  %v539 = vpop.permute.xlu0 %538
  %v540 = vsel %vm115, %v537, %v539
  %v541 = vsel %vm115, %v539, %v537
  %v542 = vsel %vm124, %v541, 0.0
  %v543 = vsel %vm125, %v540, 0.0
  %544 = vrot.lane.b32.xlu0 %v518, 127
  %v545 = vpop.permute.xlu0 %544
  %546 = vrot.lane.b32.xlu0 %v519, 127
  %v547 = vpop.permute.xlu0 %546
  %v548 = vsel %vm138, %v545, %v547
  %v549 = vsel %vm138, %v547, %v545
  %v550 = vsel %vm147, %v548, 0.0
  %v551 = vsel %vm148, %v549, 0.0
  %552 = vrot.lane.b32.xlu0 %v518, 126
  %v553 = vpop.permute.xlu0 %552
  %554 = vrot.lane.b32.xlu0 %v519, 126
  %v555 = vpop.permute.xlu0 %554
  %v556 = vsel %vm161, %v553, %v555
  %v557 = vsel %vm161, %v555, %v553
  %v558 = vsel %vm170, %v556, 0.0
  %v559 = vsel %vm171, %v557, 0.0
  %560 = vrot.lane.b32.xlu0 %v518, 125
  %v561 = vpop.permute.xlu0 %560
  %562 = vrot.lane.b32.xlu0 %v519, 125
  %v563 = vpop.permute.xlu0 %562
  %v564 = vsel %vm184, %v561, %v563
  %v565 = vsel %vm184, %v563, %v561
  %v566 = vsel %vm193, %v564, 0.0
  %v567 = vsel %vm194, %v565, 0.0
  %v570 = vrot.slane %v534, 4
  %v571 = vrot.slane %v535, 4
  %v576 = vrot.slane %v518, 4
  %v577 = vrot.slane %v519, 4
  %v582 = vrot.slane %v558, 4
  %v583 = vrot.slane %v559, 4
  %v586 = vsel %vm420, %v526, %v570
  %v587 = vsel %vm420, %v527, %v571
  %v588 = vsel %vm420, %v542, %v576
  %v589 = vsel %vm420, %v543, %v577
  %v590 = vsel %vm420, %v550, %v582
  %v591 = vsel %vm420, %v551, %v583
  %v592 = vld [vmem:[%s3] sm:$0xff]
  %v593 = vld [vmem:[%s3 + $0x8] sm:$0xff]
  %595 = vset.pattern.permute.xlu0 0
  %596 = vperm.xlu0 %595, %v59
  %v597 = vpop.permute.xlu0 %596
  %600 = vset.pattern.permute.xlu0 0
  %601 = vperm.xlu0 %600, %v60
  %v602 = vpop.permute.xlu0 %601
  %vm604 = vcmask 228352
  %v606 = vsel %vm604, %v592, 0
  %v609 = vsel %vm604, %v593, 0
  %v612 = vsel %vm420, %v566, 0
  %v615 = vsel %vm420, %v567, 0
  %617 = vmatprep.subr.mxu0 0.0
  %618 = vmatpush1.msra.mxu0 0.0
  %619 = vmatprep.subr.mxu0 0.0
  %620 = vmatpush1.msra.mxu0 0.0
  %621 = vmatprep.subr.mxu0 0.0
  %622 = vmatpush1.msra.mxu0 0.0
  %623 = vmatprep.subr.mxu0 0.0
  %624 = vmatpush1.msra.mxu0 0.0
  %625 = vmatprep.subr.mxu0 0.0
  %626 = vmatpush1.msra.mxu0 0.0
  %627 = vmatprep.subr.mxu0 0.0
  %628 = vmatpush1.msra.mxu0 0.0
  %629 = vmatprep.subr.mxu0 0.0
  %630 = vmatpush1.msra.mxu0 0.0
  %631 = vmatprep.subr.mxu0 0.0
  %632 = vmatpush1.msra.mxu0 0.0
  %633 = vmatprep.subr.mxu0 0.0
  %634 = vmatpush1.msra.mxu0 0.0
  %635 = vmatprep.subr.mxu0 0.0
  %636 = vmatpush1.msra.mxu0 0.0
  %637 = vmatprep.subr.mxu0 0.0
  %638 = vmatpush1.msra.mxu0 0.0
  %639 = vmatprep.subr.mxu0 0.0
  %640 = vmatpush1.msra.mxu0 0.0
  %641 = vmatprep.subr.mxu0 %v615
  %642 = vmatpush1.msra.mxu0 %v612
  %643 = vmatprep.subr.mxu0 %v591
  %644 = vmatpush1.msra.mxu0 %v590
  %645 = vmatprep.subr.mxu0 %v589
  %646 = vmatpush1.msra.mxu0 %v588
  %647 = vmatprep.subr.mxu0 %v587
  %648 = vmatpush1.msra.mxu0 %v586
  %649 = vmatprep.subr.mxu0 0.0
  %650 = vmatpush2.msra.mxu0 0.0
  %651 = vmatprep.subr.mxu0 0.0
  %652 = vmatpush2.msra.mxu0 0.0
  %653 = vmatprep.subr.mxu0 0.0
  %654 = vmatpush2.msra.mxu0 0.0
  %655 = vmatprep.subr.mxu0 0.0
  %656 = vmatpush2.msra.mxu0 0.0
  %657 = vmatprep.subr.mxu0 0.0
  %658 = vmatpush2.msra.mxu0 0.0
  %659 = vmatprep.subr.mxu0 0.0
  %660 = vmatpush2.msra.mxu0 0.0
  %661 = vmatprep.subr.mxu0 0.0
  %662 = vmatpush2.msra.mxu0 0.0
  %663 = vmatprep.subr.mxu0 0.0
  %664 = vmatpush2.msra.mxu0 0.0
  %665 = vmatprep.subr.mxu0 0.0
  %666 = vmatpush2.msra.mxu0 0.0
  %667 = vmatprep.subr.mxu0 0.0
  %668 = vmatpush2.msra.mxu0 0.0
  %669 = vmatprep.subr.mxu0 0.0
  %670 = vmatpush2.msra.mxu0 0.0
  %671 = vmatprep.subr.mxu0 0.0
  %672 = vmatpush2.msra.mxu0 0.0
  %673 = vmatprep.subr.mxu0 0.0
  %674 = vmatpush2.msra.mxu0 0.0
  %675 = vmatprep.subr.mxu0 0.0
  %676 = vmatpush2.msra.mxu0 0.0
  %677 = vmatprep.subr.mxu0 0.0
  %678 = vmatpush2.msra.mxu0 0.0
  %679 = vmatprep.subr.mxu0 0.0
  %680 = vmatpush2.msra.mxu0 0.0
  %681 = vmatprep.mubr.f32.mxu0 0.0
  %682 = vmatmul.mubr.f32.gmra.mxu0 %v606
  %v683 = vpop.f32.mrf.mxu0
  %v684 = vadd.f32 %v597, %v683
  %v685 = vpop.f32.mrf.mxu0
  %v686 = vadd.f32 %v597, %v685
  %687 = vmatprep.mubr.f32.mxu0 0.0
  %688 = vmatmul.mubr.f32.gmra.mxu0 %v609
  %v689 = vpop.f32.mrf.mxu0
  %v690 = vadd.f32 %v602, %v689
  %v691 = vpop.f32.mrf.mxu0
  %v692 = vadd.f32 %v602, %v691
  %693 = vdwg.mxu0
  %v694 = vcombine.high %v684, 0.0
  %v696 = vunpack.c.l.s4 1983009808
  %v697 = vunpack.c.0.s8 %v696
  %v698 = vlaneseq
  %v699 = vshrl.u32 %v698, 7
  %v700 = vsub.s32 %v697, %v699
  %v701 = vrot.slane %v684, %v700
  %v703 = vunpack.c.l.s4 1983009808
  %v704 = vunpack.c.0.s8 %v703
  %v705 = vlaneseq
  %v706 = vshrl.u32 %v705, 7
  %v707 = vsub.s32 %v704, %v706
  %v708 = vrot.slane %v694, %v707
  %v709 = vcombine.high %v686, 0.0
  %v711 = vunpack.c.l.s4 1983009808
  %v712 = vunpack.c.0.s8 %v711
  %v713 = vlaneseq
  %v714 = vshrl.u32 %v713, 7
  %v715 = vsub.s32 %v712, %v714
  %v716 = vrot.slane %v686, %v715
  %v718 = vunpack.c.l.s4 1983009808
  %v719 = vunpack.c.0.s8 %v718
  %v720 = vlaneseq
  %v721 = vshrl.u32 %v720, 7
  %v722 = vsub.s32 %v719, %v721
  %v723 = vrot.slane %v709, %v722
  %v724 = vcombine.low %v701, %v716
  %v725 = vcombine.high %v701, %v716
  %v727 = vunpack.c.l.s4 1934713408
  %v728 = vunpack.c.0.s8 %v727
  %v729 = vlaneseq
  %v730 = vshrl.u32 %v729, 7
  %v731 = vsub.s32 %v728, %v730
  %v732 = vrot.slane %v724, %v731
  %v734 = vunpack.c.l.s4 1934713408
  %v735 = vunpack.c.0.s8 %v734
  %v736 = vlaneseq
  %v737 = vshrl.u32 %v736, 7
  %v738 = vsub.s32 %v735, %v737
  %v739 = vrot.slane %v725, %v738
  %v740 = vcombine.low %v708, %v723
  %v741 = vcombine.high %v708, %v723
  %v743 = vunpack.c.l.s4 1934713408
  %v744 = vunpack.c.0.s8 %v743
  %v745 = vlaneseq
  %v746 = vshrl.u32 %v745, 7
  %v747 = vsub.s32 %v744, %v746
  %v748 = vrot.slane %v740, %v747
  %v750 = vunpack.c.l.s4 1934713408
  %v751 = vunpack.c.0.s8 %v750
  %v752 = vlaneseq
  %v753 = vshrl.u32 %v752, 7
  %v754 = vsub.s32 %v751, %v753
  %v755 = vrot.slane %v741, %v754
  %v756 = vcombine.high %v732, 0.0
  %v757 = vcombine.high %v739, 0.0
  %v758 = vcombine.high %v748, 0.0
  %v759 = vcombine.high %v755, 0.0
  %v760 = vcombine.high %v690, 0.0
  %v762 = vunpack.c.l.s4 1983009808
  %v763 = vunpack.c.0.s8 %v762
  %v764 = vlaneseq
  %v765 = vshrl.u32 %v764, 7
  %v766 = vsub.s32 %v763, %v765
  %v767 = vrot.slane %v690, %v766
  %v769 = vunpack.c.l.s4 1983009808
  %v770 = vunpack.c.0.s8 %v769
  %v771 = vlaneseq
  %v772 = vshrl.u32 %v771, 7
  %v773 = vsub.s32 %v770, %v772
  %v774 = vrot.slane %v760, %v773
  %v775 = vcombine.high %v692, 0.0
  %v777 = vunpack.c.l.s4 1983009808
  %v778 = vunpack.c.0.s8 %v777
  %v779 = vlaneseq
  %v780 = vshrl.u32 %v779, 7
  %v781 = vsub.s32 %v778, %v780
  %v782 = vrot.slane %v692, %v781
  %v784 = vunpack.c.l.s4 1983009808
  %v785 = vunpack.c.0.s8 %v784
  %v786 = vlaneseq
  %v787 = vshrl.u32 %v786, 7
  %v788 = vsub.s32 %v785, %v787
  %v789 = vrot.slane %v775, %v788
  %v790 = vcombine.low %v767, %v782
  %v791 = vcombine.high %v767, %v782
  %v793 = vunpack.c.l.s4 1934713408
  %v794 = vunpack.c.0.s8 %v793
  %v795 = vlaneseq
  %v796 = vshrl.u32 %v795, 7
  %v797 = vsub.s32 %v794, %v796
  %v798 = vrot.slane %v790, %v797
  %v800 = vunpack.c.l.s4 1934713408
  %v801 = vunpack.c.0.s8 %v800
  %v802 = vlaneseq
  %v803 = vshrl.u32 %v802, 7
  %v804 = vsub.s32 %v801, %v803
  %v805 = vrot.slane %v791, %v804
  %v806 = vcombine.low %v774, %v789
  %v807 = vcombine.high %v774, %v789
  %v809 = vunpack.c.l.s4 1934713408
  %v810 = vunpack.c.0.s8 %v809
  %v811 = vlaneseq
  %v812 = vshrl.u32 %v811, 7
  %v813 = vsub.s32 %v810, %v812
  %v814 = vrot.slane %v806, %v813
  %v816 = vunpack.c.l.s4 1934713408
  %v817 = vunpack.c.0.s8 %v816
  %v818 = vlaneseq
  %v819 = vshrl.u32 %v818, 7
  %v820 = vsub.s32 %v817, %v819
  %v821 = vrot.slane %v807, %v820
  %v822 = vcombine.high %v798, 0.0
  %v823 = vcombine.high %v805, 0.0
  %v824 = vcombine.high %v814, 0.0
  %v825 = vcombine.high %v821, 0.0
  %vm826 = vcmask 1041408
  %v827 = vsel %vm826, %v732, 0.0
  %828 = vadd.xlane.f32.xlu0 %v827
  %v829 = vpop.xlane.xlu0 %828
  %v830 = vsel %vm826, %v756, 0.0
  %831 = vadd.xlane.f32.xlu0 %v830
  %v832 = vpop.xlane.xlu0 %831
  %v833 = vsel %vm826, %v739, 0.0
  %834 = vadd.xlane.f32.xlu0 %v833
  %v835 = vpop.xlane.xlu0 %834
  %v836 = vsel %vm826, %v757, 0.0
  %837 = vadd.xlane.f32.xlu0 %v836
  %v838 = vpop.xlane.xlu0 %837
  %v839 = vsel %vm826, %v748, 0.0
  %840 = vadd.xlane.f32.xlu0 %v839
  %v841 = vpop.xlane.xlu0 %840
  %v842 = vsel %vm826, %v758, 0.0
  %843 = vadd.xlane.f32.xlu0 %v842
  %v844 = vpop.xlane.xlu0 %843
  %v845 = vsel %vm826, %v755, 0.0
  %846 = vadd.xlane.f32.xlu0 %v845
  %v847 = vpop.xlane.xlu0 %846
  %v848 = vsel %vm826, %v759, 0.0
  %849 = vadd.xlane.f32.xlu0 %v848
  %v850 = vpop.xlane.xlu0 %849
  %v851 = vsel %vm826, %v798, 0.0
  %852 = vadd.xlane.f32.xlu0 %v851
  %v853 = vpop.xlane.xlu0 %852
  %v854 = vsel %vm826, %v822, 0.0
  %855 = vadd.xlane.f32.xlu0 %v854
  %v856 = vpop.xlane.xlu0 %855
  %v857 = vsel %vm826, %v805, 0.0
  %858 = vadd.xlane.f32.xlu0 %v857
  %v859 = vpop.xlane.xlu0 %858
  %v860 = vsel %vm826, %v823, 0.0
  %861 = vadd.xlane.f32.xlu0 %v860
  %v862 = vpop.xlane.xlu0 %861
  %v863 = vsel %vm826, %v814, 0.0
  %864 = vadd.xlane.f32.xlu0 %v863
  %v865 = vpop.xlane.xlu0 %864
  %v866 = vsel %vm826, %v824, 0.0
  %867 = vadd.xlane.f32.xlu0 %v866
  %v868 = vpop.xlane.xlu0 %867
  %v869 = vsel %vm826, %v821, 0.0
  %870 = vadd.xlane.f32.xlu0 %v869
  %v871 = vpop.xlane.xlu0 %870
  %v872 = vsel %vm826, %v825, 0.0
  %873 = vadd.xlane.f32.xlu0 %v872
  %v874 = vpop.xlane.xlu0 %873
  %v875 = vrcp.pop 128.0
  %v876 = vmul.f32 %v829, %v875
  %v877 = vmul.f32 %v832, %v875
  %v878 = vmul.f32 %v835, %v875
  %v879 = vmul.f32 %v838, %v875
  %v880 = vmul.f32 %v841, %v875
  %v881 = vmul.f32 %v844, %v875
  %v882 = vmul.f32 %v847, %v875
  %v883 = vmul.f32 %v850, %v875
  %v884 = vmul.f32 %v853, %v875
  %v885 = vmul.f32 %v856, %v875
  %v886 = vmul.f32 %v859, %v875
  %v887 = vmul.f32 %v862, %v875
  %v888 = vmul.f32 %v865, %v875
  %v889 = vmul.f32 %v868, %v875
  %v890 = vmul.f32 %v871, %v875
  %v891 = vmul.f32 %v874, %v875
  %v892 = vld [vmem:[%s5] sm:$0x1]
  %v893 = vld [vmem:[%s6] sm:$0xff]
  %v894 = vld [vmem:[%s6 + $0x8] sm:$0xff]
  %v895 = vlaneseq
  %v896 = vshrl.u32 %v895, 7
  %v897 = vsub.s32 0, %v896
  %v898 = vrot.slane %v892, %v897
  %900 = vbcast.lane.b32.xlu0 %v898, 256
  %v901 = vpop.permute.xlu0 %900
  %s903 = sor.u32 256, 8
  %904 = vbcast.lane.b32.xlu0 %v898, %s903
  %v905 = vpop.permute.xlu0 %904
  %v922 = vlaneseq
  %v923 = vshrl.u32 %v922, 7
  %v924 = vsub.s32 %v31, %v923
  %v925 = vrot.slane %v876, %v924
  %v926 = vlaneseq
  %v927 = vshrl.u32 %v926, 7
  %v928 = vsub.s32 %v31, %v927
  %v929 = vrot.slane %v877, %v928
  %v930 = vlaneseq
  %v931 = vshrl.u32 %v930, 7
  %v932 = vsub.s32 %v31, %v931
  %v933 = vrot.slane %v878, %v932
  %v934 = vlaneseq
  %v935 = vshrl.u32 %v934, 7
  %v936 = vsub.s32 %v31, %v935
  %v937 = vrot.slane %v879, %v936
  %v938 = vlaneseq
  %v939 = vshrl.u32 %v938, 7
  %v940 = vsub.s32 %v31, %v939
  %v941 = vrot.slane %v880, %v940
  %v942 = vlaneseq
  %v943 = vshrl.u32 %v942, 7
  %v944 = vsub.s32 %v31, %v943
  %v945 = vrot.slane %v881, %v944
  %v946 = vlaneseq
  %v947 = vshrl.u32 %v946, 7
  %v948 = vsub.s32 %v31, %v947
  %v949 = vrot.slane %v882, %v948
  %v950 = vlaneseq
  %v951 = vshrl.u32 %v950, 7
  %v952 = vsub.s32 %v31, %v951
  %v953 = vrot.slane %v883, %v952
  %v954 = vlaneseq
  %v955 = vshrl.u32 %v954, 7
  %v956 = vsub.s32 %v31, %v955
  %v957 = vrot.slane %v884, %v956
  %v958 = vlaneseq
  %v959 = vshrl.u32 %v958, 7
  %v960 = vsub.s32 %v31, %v959
  %v961 = vrot.slane %v885, %v960
  %v962 = vlaneseq
  %v963 = vshrl.u32 %v962, 7
  %v964 = vsub.s32 %v31, %v963
  %v965 = vrot.slane %v886, %v964
  %v966 = vlaneseq
  %v967 = vshrl.u32 %v966, 7
  %v968 = vsub.s32 %v31, %v967
  %v969 = vrot.slane %v887, %v968
  %v970 = vlaneseq
  %v971 = vshrl.u32 %v970, 7
  %v972 = vsub.s32 %v31, %v971
  %v973 = vrot.slane %v888, %v972
  %v974 = vlaneseq
  %v975 = vshrl.u32 %v974, 7
  %v976 = vsub.s32 %v31, %v975
  %v977 = vrot.slane %v889, %v976
  %v978 = vlaneseq
  %v979 = vshrl.u32 %v978, 7
  %v980 = vsub.s32 %v31, %v979
  %v981 = vrot.slane %v890, %v980
  %v982 = vlaneseq
  %v983 = vshrl.u32 %v982, 7
  %v984 = vsub.s32 %v31, %v983
  %v985 = vrot.slane %v891, %v984
  %vm986 = vcmask 1041409
  %v987 = vsel %vm986, %v929, %v925
  %vm988 = vcmask 1042434
  %v989 = vsel %vm988, %v933, %v987
  %vm990 = vcmask 1043459
  %v991 = vsel %vm990, %v937, %v989
  %vm992 = vcmask 1044484
  %v993 = vsel %vm992, %v941, %v991
  %vm994 = vcmask 1045509
  %v995 = vsel %vm994, %v945, %v993
  %vm996 = vcmask 1046534
  %v997 = vsel %vm996, %v949, %v995
  %vm998 = vcmask 1047559
  %v999 = vsel %vm998, %v953, %v997
  %v1000 = vsel %vm986, %v961, %v957
  %v1001 = vsel %vm988, %v965, %v1000
  %v1002 = vsel %vm990, %v969, %v1001
  %v1003 = vsel %vm992, %v973, %v1002
  %v1004 = vsel %vm994, %v977, %v1003
  %v1005 = vsel %vm996, %v981, %v1004
  %v1006 = vsel %vm998, %v985, %v1005
  %v1009 = vmul.f32 %v901, %v999
  %v1010 = vmul.f32 %v905, %v1006
  %vm1011 = vcmask 15360
  %v1012 = vsel %vm1011, %v1009, 0.0
  %v1013 = vsel %vm1011, %v1010, 0.0
  %v1014 = vadd.f32 %v1012, %v1013
  %v1015 = vrot.slane %v1014, 4
  %v1016 = vadd.f32 %v1014, %v1015
  %v1017 = vrot.slane %v1016, 2
  %v1018 = vadd.f32 %v1016, %v1017
  %v1019 = vrot.slane %v1018, 1
  %v1020 = vadd.f32 %v1018, %v1019
  %v1021 = vmax.f32 %v1020, 0.0
  %v1024 = vcombine.high %v893, %v893
  %v1026 = vunpack.c.l.s4 1966171168
  %v1027 = vunpack.c.0.s8 %v1026
  %v1028 = vlaneseq
  %v1029 = vshrl.u32 %v1028, 7
  %v1030 = vsub.s32 %v1027, %v1029
  %v1031 = vrot.slane %v893, %v1030
  %v1033 = vunpack.c.l.s4 1966171168
  %v1034 = vunpack.c.0.s8 %v1033
  %v1035 = vlaneseq
  %v1036 = vshrl.u32 %v1035, 7
  %v1037 = vsub.s32 %v1034, %v1036
  %v1038 = vrot.slane %v1024, %v1037
  %v1039 = vcombine.high %v1031, %v1031
  %v1040 = vcombine.high %v1038, %v1038
  %v1042 = vunpack.c.l.s4 1966171168
  %v1043 = vunpack.c.0.s8 %v1042
  %v1044 = vlaneseq
  %v1045 = vshrl.u32 %v1044, 7
  %v1046 = vsub.s32 %v1043, %v1045
  %v1047 = vrot.slane %v1031, %v1046
  %v1049 = vunpack.c.l.s4 1966171168
  %v1050 = vunpack.c.0.s8 %v1049
  %v1051 = vlaneseq
  %v1052 = vshrl.u32 %v1051, 7
  %v1053 = vsub.s32 %v1050, %v1052
  %v1054 = vrot.slane %v1038, %v1053
  %v1056 = vunpack.c.l.s4 1966171168
  %v1057 = vunpack.c.0.s8 %v1056
  %v1058 = vlaneseq
  %v1059 = vshrl.u32 %v1058, 7
  %v1060 = vsub.s32 %v1057, %v1059
  %v1061 = vrot.slane %v1039, %v1060
  %v1063 = vunpack.c.l.s4 1966171168
  %v1064 = vunpack.c.0.s8 %v1063
  %v1065 = vlaneseq
  %v1066 = vshrl.u32 %v1065, 7
  %v1067 = vsub.s32 %v1064, %v1066
  %v1068 = vrot.slane %v1040, %v1067
  %v1069 = vcombine.high %v1047, %v1047
  %v1070 = vcombine.high %v1054, %v1054
  %v1071 = vcombine.high %v1061, %v1061
  %v1072 = vcombine.high %v1068, %v1068
  %v1073 = vcombine.high %v894, %v894
  %v1075 = vunpack.c.l.s4 1966171168
  %v1076 = vunpack.c.0.s8 %v1075
  %v1077 = vlaneseq
  %v1078 = vshrl.u32 %v1077, 7
  %v1079 = vsub.s32 %v1076, %v1078
  %v1080 = vrot.slane %v894, %v1079
  %v1082 = vunpack.c.l.s4 1966171168
  %v1083 = vunpack.c.0.s8 %v1082
  %v1084 = vlaneseq
  %v1085 = vshrl.u32 %v1084, 7
  %v1086 = vsub.s32 %v1083, %v1085
  %v1087 = vrot.slane %v1073, %v1086
  %v1088 = vcombine.high %v1080, %v1080
  %v1089 = vcombine.high %v1087, %v1087
  %v1091 = vunpack.c.l.s4 1966171168
  %v1092 = vunpack.c.0.s8 %v1091
  %v1093 = vlaneseq
  %v1094 = vshrl.u32 %v1093, 7
  %v1095 = vsub.s32 %v1092, %v1094
  %v1096 = vrot.slane %v1080, %v1095
  %v1098 = vunpack.c.l.s4 1966171168
  %v1099 = vunpack.c.0.s8 %v1098
  %v1100 = vlaneseq
  %v1101 = vshrl.u32 %v1100, 7
  %v1102 = vsub.s32 %v1099, %v1101
  %v1103 = vrot.slane %v1087, %v1102
  %v1105 = vunpack.c.l.s4 1966171168
  %v1106 = vunpack.c.0.s8 %v1105
  %v1107 = vlaneseq
  %v1108 = vshrl.u32 %v1107, 7
  %v1109 = vsub.s32 %v1106, %v1108
  %v1110 = vrot.slane %v1088, %v1109
  %v1112 = vunpack.c.l.s4 1966171168
  %v1113 = vunpack.c.0.s8 %v1112
  %v1114 = vlaneseq
  %v1115 = vshrl.u32 %v1114, 7
  %v1116 = vsub.s32 %v1113, %v1115
  %v1117 = vrot.slane %v1089, %v1116
  %v1118 = vcombine.high %v1096, %v1096
  %v1119 = vcombine.high %v1103, %v1103
  %v1120 = vcombine.high %v1110, %v1110
  %v1121 = vcombine.high %v1117, %v1117
  %1122 = vset.pattern.permute.xlu0 0
  %1123 = vperm.xlu0 %1122, %v1047
  %v1124 = vpop.permute.xlu0 %1123
  %v1126 = vlaneseq
  %v1127 = vshrl.u32 %v1126, 7
  %v1128 = vsub.s32 0, %v1127
  %v1129 = vrot.slane %v1124, %v1128
  %1130 = vset.pattern.permute.xlu0 0
  %1131 = vperm.xlu0 %1130, %v1061
  %v1132 = vpop.permute.xlu0 %1131
  %v1134 = vlaneseq
  %v1135 = vshrl.u32 %v1134, 7
  %v1136 = vsub.s32 0, %v1135
  %v1137 = vrot.slane %v1132, %v1136
  %1138 = vset.pattern.permute.xlu0 0
  %1139 = vperm.xlu0 %1138, %v1069
  %v1140 = vpop.permute.xlu0 %1139
  %v1142 = vlaneseq
  %v1143 = vshrl.u32 %v1142, 7
  %v1144 = vsub.s32 0, %v1143
  %v1145 = vrot.slane %v1140, %v1144
  %1146 = vset.pattern.permute.xlu0 0
  %1147 = vperm.xlu0 %1146, %v1071
  %v1148 = vpop.permute.xlu0 %1147
  %v1150 = vlaneseq
  %v1151 = vshrl.u32 %v1150, 7
  %v1152 = vsub.s32 0, %v1151
  %v1153 = vrot.slane %v1148, %v1152
  %1154 = vset.pattern.permute.xlu0 0
  %1155 = vperm.xlu0 %1154, %v1054
  %v1156 = vpop.permute.xlu0 %1155
  %v1158 = vlaneseq
  %v1159 = vshrl.u32 %v1158, 7
  %v1160 = vsub.s32 0, %v1159
  %v1161 = vrot.slane %v1156, %v1160
  %1162 = vset.pattern.permute.xlu0 0
  %1163 = vperm.xlu0 %1162, %v1068
  %v1164 = vpop.permute.xlu0 %1163
  %v1166 = vlaneseq
  %v1167 = vshrl.u32 %v1166, 7
  %v1168 = vsub.s32 0, %v1167
  %v1169 = vrot.slane %v1164, %v1168
  %1170 = vset.pattern.permute.xlu0 0
  %1171 = vperm.xlu0 %1170, %v1070
  %v1172 = vpop.permute.xlu0 %1171
  %v1174 = vlaneseq
  %v1175 = vshrl.u32 %v1174, 7
  %v1176 = vsub.s32 0, %v1175
  %v1177 = vrot.slane %v1172, %v1176
  %1178 = vset.pattern.permute.xlu0 0
  %1179 = vperm.xlu0 %1178, %v1072
  %v1180 = vpop.permute.xlu0 %1179
  %v1182 = vlaneseq
  %v1183 = vshrl.u32 %v1182, 7
  %v1184 = vsub.s32 0, %v1183
  %v1185 = vrot.slane %v1180, %v1184
  %1186 = vset.pattern.permute.xlu0 0
  %1187 = vperm.xlu0 %1186, %v1096
  %v1188 = vpop.permute.xlu0 %1187
  %v1190 = vlaneseq
  %v1191 = vshrl.u32 %v1190, 7
  %v1192 = vsub.s32 0, %v1191
  %v1193 = vrot.slane %v1188, %v1192
  %1194 = vset.pattern.permute.xlu0 0
  %1195 = vperm.xlu0 %1194, %v1110
  %v1196 = vpop.permute.xlu0 %1195
  %v1198 = vlaneseq
  %v1199 = vshrl.u32 %v1198, 7
  %v1200 = vsub.s32 0, %v1199
  %v1201 = vrot.slane %v1196, %v1200
  %1202 = vset.pattern.permute.xlu0 0
  %1203 = vperm.xlu0 %1202, %v1118
  %v1204 = vpop.permute.xlu0 %1203
  %v1206 = vlaneseq
  %v1207 = vshrl.u32 %v1206, 7
  %v1208 = vsub.s32 0, %v1207
  %v1209 = vrot.slane %v1204, %v1208
  %1210 = vset.pattern.permute.xlu0 0
  %1211 = vperm.xlu0 %1210, %v1120
  %v1212 = vpop.permute.xlu0 %1211
  %v1214 = vlaneseq
  %v1215 = vshrl.u32 %v1214, 7
  %v1216 = vsub.s32 0, %v1215
  %v1217 = vrot.slane %v1212, %v1216
  %1218 = vset.pattern.permute.xlu0 0
  %1219 = vperm.xlu0 %1218, %v1103
  %v1220 = vpop.permute.xlu0 %1219
  %v1222 = vlaneseq
  %v1223 = vshrl.u32 %v1222, 7
  %v1224 = vsub.s32 0, %v1223
  %v1225 = vrot.slane %v1220, %v1224
  %1226 = vset.pattern.permute.xlu0 0
  %1227 = vperm.xlu0 %1226, %v1117
  %v1228 = vpop.permute.xlu0 %1227
  %v1230 = vlaneseq
  %v1231 = vshrl.u32 %v1230, 7
  %v1232 = vsub.s32 0, %v1231
  %v1233 = vrot.slane %v1228, %v1232
  %1234 = vset.pattern.permute.xlu0 0
  %1235 = vperm.xlu0 %1234, %v1119
  %v1236 = vpop.permute.xlu0 %1235
  %v1238 = vlaneseq
  %v1239 = vshrl.u32 %v1238, 7
  %v1240 = vsub.s32 0, %v1239
  %v1241 = vrot.slane %v1236, %v1240
  %1242 = vset.pattern.permute.xlu0 0
  %1243 = vperm.xlu0 %1242, %v1121
  %v1244 = vpop.permute.xlu0 %1243
  %v1246 = vlaneseq
  %v1247 = vshrl.u32 %v1246, 7
  %v1248 = vsub.s32 0, %v1247
  %v1249 = vrot.slane %v1244, %v1248
  %v1250 = vmul.f32 %v1129, %v1021
  %v1251 = vmul.f32 %v1137, %v1021
  %v1252 = vmul.f32 %v1145, %v1021
  %v1253 = vmul.f32 %v1153, %v1021
  %v1254 = vmul.f32 %v1161, %v1021
  %v1255 = vmul.f32 %v1169, %v1021
  %v1256 = vmul.f32 %v1177, %v1021
  %v1257 = vmul.f32 %v1185, %v1021
  %v1258 = vmul.f32 %v1193, %v1021
  %v1259 = vmul.f32 %v1201, %v1021
  %v1260 = vmul.f32 %v1209, %v1021
  %v1261 = vmul.f32 %v1217, %v1021
  %v1262 = vmul.f32 %v1225, %v1021
  %v1263 = vmul.f32 %v1233, %v1021
  %v1264 = vmul.f32 %v1241, %v1021
  %v1265 = vmul.f32 %v1249, %v1021
  %v1266 = vadd.f32 %v1250, 0.0
  %v1267 = vadd.f32 %v1251, 0.0
  %v1268 = vadd.f32 %v1252, 0.0
  %v1269 = vadd.f32 %v1253, 0.0
  %v1270 = vadd.f32 %v1254, 0.0
  %v1271 = vadd.f32 %v1255, 0.0
  %v1272 = vadd.f32 %v1256, 0.0
  %v1273 = vadd.f32 %v1257, 0.0
  %v1274 = vadd.f32 %v1258, 0.0
  %v1275 = vadd.f32 %v1259, 0.0
  %v1276 = vadd.f32 %v1260, 0.0
  %v1277 = vadd.f32 %v1261, 0.0
  %v1278 = vadd.f32 %v1262, 0.0
  %v1279 = vadd.f32 %v1263, 0.0
  %v1280 = vadd.f32 %v1264, 0.0
  %v1281 = vadd.f32 %v1265, 0.0
  %v1282 = vxor.u32 %v1266, 2147483648
  %v1283 = vxor.u32 %v1267, 2147483648
  %v1284 = vxor.u32 %v1268, 2147483648
  %v1285 = vxor.u32 %v1269, 2147483648
  %v1286 = vxor.u32 %v1270, 2147483648
  %v1287 = vxor.u32 %v1271, 2147483648
  %v1288 = vxor.u32 %v1272, 2147483648
  %v1289 = vxor.u32 %v1273, 2147483648
  %v1290 = vxor.u32 %v1274, 2147483648
  %v1291 = vxor.u32 %v1275, 2147483648
  %v1292 = vxor.u32 %v1276, 2147483648
  %v1293 = vxor.u32 %v1277, 2147483648
  %v1294 = vxor.u32 %v1278, 2147483648
  %v1295 = vxor.u32 %v1279, 2147483648
  %v1296 = vxor.u32 %v1280, 2147483648
  %v1297 = vxor.u32 %v1281, 2147483648
  %v1298 = vmul.f32 %v1282, 1.442695
  %v1299 = vpow.pop %v1298
  %v1300 = vmul.f32 %v1283, 1.442695
  %v1301 = vpow.pop %v1300
  %v1302 = vmul.f32 %v1284, 1.442695
  %v1303 = vpow.pop %v1302
  %v1304 = vmul.f32 %v1285, 1.442695
  %v1305 = vpow.pop %v1304
  %v1306 = vmul.f32 %v1286, 1.442695
  %v1307 = vpow.pop %v1306
  %v1308 = vmul.f32 %v1287, 1.442695
  %v1309 = vpow.pop %v1308
  %v1310 = vmul.f32 %v1288, 1.442695
  %v1311 = vpow.pop %v1310
  %v1312 = vmul.f32 %v1289, 1.442695
  %v1313 = vpow.pop %v1312
  %v1314 = vmul.f32 %v1290, 1.442695
  %v1315 = vpow.pop %v1314
  %v1316 = vmul.f32 %v1291, 1.442695
  %v1317 = vpow.pop %v1316
  %v1318 = vmul.f32 %v1292, 1.442695
  %v1319 = vpow.pop %v1318
  %v1320 = vmul.f32 %v1293, 1.442695
  %v1321 = vpow.pop %v1320
  %v1322 = vmul.f32 %v1294, 1.442695
  %v1323 = vpow.pop %v1322
  %v1324 = vmul.f32 %v1295, 1.442695
  %v1325 = vpow.pop %v1324
  %v1326 = vmul.f32 %v1296, 1.442695
  %v1327 = vpow.pop %v1326
  %v1328 = vmul.f32 %v1297, 1.442695
  %v1329 = vpow.pop %v1328
  %v1330 = vadd.f32 %v1299, 1.0
  %v1331 = vadd.f32 %v1301, 1.0
  %v1332 = vadd.f32 %v1303, 1.0
  %v1333 = vadd.f32 %v1305, 1.0
  %v1334 = vadd.f32 %v1307, 1.0
  %v1335 = vadd.f32 %v1309, 1.0
  %v1336 = vadd.f32 %v1311, 1.0
  %v1337 = vadd.f32 %v1313, 1.0
  %v1338 = vadd.f32 %v1315, 1.0
  %v1339 = vadd.f32 %v1317, 1.0
  %v1340 = vadd.f32 %v1319, 1.0
  %v1341 = vadd.f32 %v1321, 1.0
  %v1342 = vadd.f32 %v1323, 1.0
  %v1343 = vadd.f32 %v1325, 1.0
  %v1344 = vadd.f32 %v1327, 1.0
  %v1345 = vadd.f32 %v1329, 1.0
  %v1346 = vrcp.pop %v1330
  %v1347 = vmul.f32 1.0, %v1346
  %v1348 = vrcp.pop %v1331
  %v1349 = vmul.f32 1.0, %v1348
  %v1350 = vrcp.pop %v1332
  %v1351 = vmul.f32 1.0, %v1350
  %v1352 = vrcp.pop %v1333
  %v1353 = vmul.f32 1.0, %v1352
  %v1354 = vrcp.pop %v1334
  %v1355 = vmul.f32 1.0, %v1354
  %v1356 = vrcp.pop %v1335
  %v1357 = vmul.f32 1.0, %v1356
  %v1358 = vrcp.pop %v1336
  %v1359 = vmul.f32 1.0, %v1358
  %v1360 = vrcp.pop %v1337
  %v1361 = vmul.f32 1.0, %v1360
  %v1362 = vrcp.pop %v1338
  %v1363 = vmul.f32 1.0, %v1362
  %v1364 = vrcp.pop %v1339
  %v1365 = vmul.f32 1.0, %v1364
  %v1366 = vrcp.pop %v1340
  %v1367 = vmul.f32 1.0, %v1366
  %v1368 = vrcp.pop %v1341
  %v1369 = vmul.f32 1.0, %v1368
  %v1370 = vrcp.pop %v1342
  %v1371 = vmul.f32 1.0, %v1370
  %v1372 = vrcp.pop %v1343
  %v1373 = vmul.f32 1.0, %v1372
  %v1374 = vrcp.pop %v1344
  %v1375 = vmul.f32 1.0, %v1374
  %v1376 = vrcp.pop %v1345
  %v1377 = vmul.f32 1.0, %v1376
  %1379 = vbcast.lane.b32.xlu0 %v1347, 256
  %v1380 = vpop.permute.xlu0 %1379
  %1382 = vbcast.lane.b32.xlu0 %v1349, 256
  %v1383 = vpop.permute.xlu0 %1382
  %1385 = vbcast.lane.b32.xlu0 %v1351, 256
  %v1386 = vpop.permute.xlu0 %1385
  %1388 = vbcast.lane.b32.xlu0 %v1353, 256
  %v1389 = vpop.permute.xlu0 %1388
  %1391 = vbcast.lane.b32.xlu0 %v1355, 256
  %v1392 = vpop.permute.xlu0 %1391
  %1394 = vbcast.lane.b32.xlu0 %v1357, 256
  %v1395 = vpop.permute.xlu0 %1394
  %1397 = vbcast.lane.b32.xlu0 %v1359, 256
  %v1398 = vpop.permute.xlu0 %1397
  %1400 = vbcast.lane.b32.xlu0 %v1361, 256
  %v1401 = vpop.permute.xlu0 %1400
  %1403 = vbcast.lane.b32.xlu0 %v1363, 256
  %v1404 = vpop.permute.xlu0 %1403
  %1406 = vbcast.lane.b32.xlu0 %v1365, 256
  %v1407 = vpop.permute.xlu0 %1406
  %1409 = vbcast.lane.b32.xlu0 %v1367, 256
  %v1410 = vpop.permute.xlu0 %1409
  %1412 = vbcast.lane.b32.xlu0 %v1369, 256
  %v1413 = vpop.permute.xlu0 %1412
  %1415 = vbcast.lane.b32.xlu0 %v1371, 256
  %v1416 = vpop.permute.xlu0 %1415
  %1418 = vbcast.lane.b32.xlu0 %v1373, 256
  %v1419 = vpop.permute.xlu0 %1418
  %1421 = vbcast.lane.b32.xlu0 %v1375, 256
  %v1422 = vpop.permute.xlu0 %1421
  %1424 = vbcast.lane.b32.xlu0 %v1377, 256
  %v1425 = vpop.permute.xlu0 %1424
  %v1426 = vmul.f32 %v1380, %v732
  %v1427 = vmul.f32 %v1383, %v756
  %v1428 = vmul.f32 %v1386, %v739
  %v1429 = vmul.f32 %v1389, %v757
  %v1430 = vmul.f32 %v1392, %v748
  %v1431 = vmul.f32 %v1395, %v758
  %v1432 = vmul.f32 %v1398, %v755
  %v1433 = vmul.f32 %v1401, %v759
  %v1434 = vmul.f32 %v1404, %v798
  %v1435 = vmul.f32 %v1407, %v822
  %v1436 = vmul.f32 %v1410, %v805
  %v1437 = vmul.f32 %v1413, %v823
  %v1438 = vmul.f32 %v1416, %v814
  %v1439 = vmul.f32 %v1419, %v824
  %v1440 = vmul.f32 %v1422, %v821
  %v1441 = vmul.f32 %v1425, %v825
  %v1442 = vld [vmem:[%s0] sm:$0xff]
  %v1443 = vcombine.high %v26, 0.0
  %v1445 = vunpack.c.l.s4 1983009808
  %v1446 = vunpack.c.0.s8 %v1445
  %v1447 = vlaneseq
  %v1448 = vshrl.u32 %v1447, 7
  %v1449 = vsub.s32 %v1446, %v1448
  %v1450 = vrot.slane %v1442, %v1449
  %v1452 = vunpack.c.l.s4 1983009808
  %v1453 = vunpack.c.0.s8 %v1452
  %v1454 = vlaneseq
  %v1455 = vshrl.u32 %v1454, 7
  %v1456 = vsub.s32 %v1453, %v1455
  %v1457 = vrot.slane %v1443, %v1456
  %v1458 = vld [vmem:[%s0 + $0x8] sm:$0xff]
  %v1459 = vcombine.high %v27, 0.0
  %v1461 = vunpack.c.l.s4 1983009808
  %v1462 = vunpack.c.0.s8 %v1461
  %v1463 = vlaneseq
  %v1464 = vshrl.u32 %v1463, 7
  %v1465 = vsub.s32 %v1462, %v1464
  %v1466 = vrot.slane %v1458, %v1465
  %v1468 = vunpack.c.l.s4 1983009808
  %v1469 = vunpack.c.0.s8 %v1468
  %v1470 = vlaneseq
  %v1471 = vshrl.u32 %v1470, 7
  %v1472 = vsub.s32 %v1469, %v1471
  %v1473 = vrot.slane %v1459, %v1472
  %v1474 = vcombine.low %v1450, %v1466
  %v1475 = vcombine.high %v1450, %v1466
  %v1477 = vunpack.c.l.s4 1934713408
  %v1478 = vunpack.c.0.s8 %v1477
  %v1479 = vlaneseq
  %v1480 = vshrl.u32 %v1479, 7
  %v1481 = vsub.s32 %v1478, %v1480
  %v1482 = vrot.slane %v1474, %v1481
  %v1484 = vunpack.c.l.s4 1934713408
  %v1485 = vunpack.c.0.s8 %v1484
  %v1486 = vlaneseq
  %v1487 = vshrl.u32 %v1486, 7
  %v1488 = vsub.s32 %v1485, %v1487
  %v1489 = vrot.slane %v1475, %v1488
  %v1490 = vcombine.low %v1457, %v1473
  %v1491 = vcombine.high %v1457, %v1473
  %v1493 = vunpack.c.l.s4 1934713408
  %v1494 = vunpack.c.0.s8 %v1493
  %v1495 = vlaneseq
  %v1496 = vshrl.u32 %v1495, 7
  %v1497 = vsub.s32 %v1494, %v1496
  %v1498 = vrot.slane %v1490, %v1497
  %v1500 = vunpack.c.l.s4 1934713408
  %v1501 = vunpack.c.0.s8 %v1500
  %v1502 = vlaneseq
  %v1503 = vshrl.u32 %v1502, 7
  %v1504 = vsub.s32 %v1501, %v1503
  %v1505 = vrot.slane %v1491, %v1504
  %v1506 = vcombine.high %v1482, 0.0
  %v1507 = vcombine.high %v1489, 0.0
  %v1508 = vcombine.high %v1498, 0.0
  %v1509 = vcombine.high %v1505, 0.0
  %v1510 = vld [vmem:[%s0 + $0x10] sm:$0xff]
  %v1511 = vcombine.high %v28, 0.0
  %v1513 = vunpack.c.l.s4 1983009808
  %v1514 = vunpack.c.0.s8 %v1513
  %v1515 = vlaneseq
  %v1516 = vshrl.u32 %v1515, 7
  %v1517 = vsub.s32 %v1514, %v1516
  %v1518 = vrot.slane %v1510, %v1517
  %v1520 = vunpack.c.l.s4 1983009808
  %v1521 = vunpack.c.0.s8 %v1520
  %v1522 = vlaneseq
  %v1523 = vshrl.u32 %v1522, 7
  %v1524 = vsub.s32 %v1521, %v1523
  %v1525 = vrot.slane %v1511, %v1524
  %v1526 = vld [vmem:[%s0 + $0x18] sm:$0xff]
  %v1527 = vcombine.high %v29, 0.0
  %v1529 = vunpack.c.l.s4 1983009808
  %v1530 = vunpack.c.0.s8 %v1529
  %v1531 = vlaneseq
  %v1532 = vshrl.u32 %v1531, 7
  %v1533 = vsub.s32 %v1530, %v1532
  %v1534 = vrot.slane %v1526, %v1533
  %v1536 = vunpack.c.l.s4 1983009808
  %v1537 = vunpack.c.0.s8 %v1536
  %v1538 = vlaneseq
  %v1539 = vshrl.u32 %v1538, 7
  %v1540 = vsub.s32 %v1537, %v1539
  %v1541 = vrot.slane %v1527, %v1540
  %v1542 = vcombine.low %v1518, %v1534
  %v1543 = vcombine.high %v1518, %v1534
  %v1545 = vunpack.c.l.s4 1934713408
  %v1546 = vunpack.c.0.s8 %v1545
  %v1547 = vlaneseq
  %v1548 = vshrl.u32 %v1547, 7
  %v1549 = vsub.s32 %v1546, %v1548
  %v1550 = vrot.slane %v1542, %v1549
  %v1552 = vunpack.c.l.s4 1934713408
  %v1553 = vunpack.c.0.s8 %v1552
  %v1554 = vlaneseq
  %v1555 = vshrl.u32 %v1554, 7
  %v1556 = vsub.s32 %v1553, %v1555
  %v1557 = vrot.slane %v1543, %v1556
  %v1558 = vcombine.low %v1525, %v1541
  %v1559 = vcombine.high %v1525, %v1541
  %v1561 = vunpack.c.l.s4 1934713408
  %v1562 = vunpack.c.0.s8 %v1561
  %v1563 = vlaneseq
  %v1564 = vshrl.u32 %v1563, 7
  %v1565 = vsub.s32 %v1562, %v1564
  %v1566 = vrot.slane %v1558, %v1565
  %v1568 = vunpack.c.l.s4 1934713408
  %v1569 = vunpack.c.0.s8 %v1568
  %v1570 = vlaneseq
  %v1571 = vshrl.u32 %v1570, 7
  %v1572 = vsub.s32 %v1569, %v1571
  %v1573 = vrot.slane %v1559, %v1572
  %v1574 = vcombine.high %v1550, 0.0
  %v1575 = vcombine.high %v1557, 0.0
  %v1576 = vcombine.high %v1566, 0.0
  %v1577 = vcombine.high %v1573, 0.0
  %v1578 = vadd.f32 %v1426, %v1482
  %v1579 = vadd.f32 %v1427, %v1506
  %v1580 = vadd.f32 %v1428, %v1489
  %v1581 = vadd.f32 %v1429, %v1507
  %v1582 = vadd.f32 %v1430, %v1498
  %v1583 = vadd.f32 %v1431, %v1508
  %v1584 = vadd.f32 %v1432, %v1505
  %v1585 = vadd.f32 %v1433, %v1509
  %v1586 = vadd.f32 %v1434, %v1550
  %v1587 = vadd.f32 %v1435, %v1574
  %v1588 = vadd.f32 %v1436, %v1557
  %v1589 = vadd.f32 %v1437, %v1575
  %v1590 = vadd.f32 %v1438, %v1566
  %v1591 = vadd.f32 %v1439, %v1576
  %v1592 = vadd.f32 %v1440, %v1573
  %v1593 = vadd.f32 %v1441, %v1577
  %v1594 = vmax.f32 %v1578, 0.0
  %v1595 = vmax.f32 %v1579, 0.0
  %v1596 = vmax.f32 %v1580, 0.0
  %v1597 = vmax.f32 %v1581, 0.0
  %v1598 = vmax.f32 %v1582, 0.0
  %v1599 = vmax.f32 %v1583, 0.0
  %v1600 = vmax.f32 %v1584, 0.0
  %v1601 = vmax.f32 %v1585, 0.0
  %v1602 = vmax.f32 %v1586, 0.0
  %v1603 = vmax.f32 %v1587, 0.0
  %v1604 = vmax.f32 %v1588, 0.0
  %v1605 = vmax.f32 %v1589, 0.0
  %v1606 = vmax.f32 %v1590, 0.0
  %v1607 = vmax.f32 %v1591, 0.0
  %v1608 = vmax.f32 %v1592, 0.0
  %v1609 = vmax.f32 %v1593, 0.0
  %v1610 = vcombine.low %v1594, %v1596
  %v1612 = vunpack.c.l.s4 1983009808
  %v1613 = vunpack.c.0.s8 %v1612
  %v1614 = vlaneseq
  %v1615 = vshrl.u32 %v1614, 7
  %v1616 = vsub.s32 %v1613, %v1615
  %v1617 = vrot.slane %v1610, %v1616
  %v1618 = vcombine.low %v1595, %v1597
  %v1620 = vunpack.c.l.s4 1983009808
  %v1621 = vunpack.c.0.s8 %v1620
  %v1622 = vlaneseq
  %v1623 = vshrl.u32 %v1622, 7
  %v1624 = vsub.s32 %v1621, %v1623
  %v1625 = vrot.slane %v1618, %v1624
  %v1626 = vcombine.low %v1598, %v1600
  %v1628 = vunpack.c.l.s4 1983009808
  %v1629 = vunpack.c.0.s8 %v1628
  %v1630 = vlaneseq
  %v1631 = vshrl.u32 %v1630, 7
  %v1632 = vsub.s32 %v1629, %v1631
  %v1633 = vrot.slane %v1626, %v1632
  %v1634 = vcombine.low %v1599, %v1601
  %v1636 = vunpack.c.l.s4 1983009808
  %v1637 = vunpack.c.0.s8 %v1636
  %v1638 = vlaneseq
  %v1639 = vshrl.u32 %v1638, 7
  %v1640 = vsub.s32 %v1637, %v1639
  %v1641 = vrot.slane %v1634, %v1640
  %v1642 = vcombine.low %v1617, %v1625
  %v1644 = vunpack.c.l.s4 1934713408
  %v1645 = vunpack.c.0.s8 %v1644
  %v1646 = vlaneseq
  %v1647 = vshrl.u32 %v1646, 7
  %v1648 = vsub.s32 %v1645, %v1647
  %v1649 = vrot.slane %v1642, %v1648
  %v1650 = vcombine.low %v1633, %v1641
  %v1652 = vunpack.c.l.s4 1934713408
  %v1653 = vunpack.c.0.s8 %v1652
  %v1654 = vlaneseq
  %v1655 = vshrl.u32 %v1654, 7
  %v1656 = vsub.s32 %v1653, %v1655
  %v1657 = vrot.slane %v1650, %v1656
  %v1658 = vcombine.low %v1649, %v1657
  %v1659 = vcombine.high %v1649, %v1657
  %v1660 = vcombine.low %v1602, %v1604
  %v1662 = vunpack.c.l.s4 1983009808
  %v1663 = vunpack.c.0.s8 %v1662
  %v1664 = vlaneseq
  %v1665 = vshrl.u32 %v1664, 7
  %v1666 = vsub.s32 %v1663, %v1665
  %v1667 = vrot.slane %v1660, %v1666
  %v1668 = vcombine.low %v1603, %v1605
  %v1670 = vunpack.c.l.s4 1983009808
  %v1671 = vunpack.c.0.s8 %v1670
  %v1672 = vlaneseq
  %v1673 = vshrl.u32 %v1672, 7
  %v1674 = vsub.s32 %v1671, %v1673
  %v1675 = vrot.slane %v1668, %v1674
  %v1676 = vcombine.low %v1606, %v1608
  %v1678 = vunpack.c.l.s4 1983009808
  %v1679 = vunpack.c.0.s8 %v1678
  %v1680 = vlaneseq
  %v1681 = vshrl.u32 %v1680, 7
  %v1682 = vsub.s32 %v1679, %v1681
  %v1683 = vrot.slane %v1676, %v1682
  %v1684 = vcombine.low %v1607, %v1609
  %v1686 = vunpack.c.l.s4 1983009808
  %v1687 = vunpack.c.0.s8 %v1686
  %v1688 = vlaneseq
  %v1689 = vshrl.u32 %v1688, 7
  %v1690 = vsub.s32 %v1687, %v1689
  %v1691 = vrot.slane %v1684, %v1690
  %v1692 = vcombine.low %v1667, %v1675
  %v1694 = vunpack.c.l.s4 1934713408
  %v1695 = vunpack.c.0.s8 %v1694
  %v1696 = vlaneseq
  %v1697 = vshrl.u32 %v1696, 7
  %v1698 = vsub.s32 %v1695, %v1697
  %v1699 = vrot.slane %v1692, %v1698
  %v1700 = vcombine.low %v1683, %v1691
  %v1702 = vunpack.c.l.s4 1934713408
  %v1703 = vunpack.c.0.s8 %v1702
  %v1704 = vlaneseq
  %v1705 = vshrl.u32 %v1704, 7
  %v1706 = vsub.s32 %v1703, %v1705
  %v1707 = vrot.slane %v1700, %v1706
  %v1708 = vcombine.low %v1699, %v1707
  %v1709 = vcombine.high %v1699, %v1707
  %1710 = vst [vmem:[%s7] sm:$0xff] %v1658
  %1711 = vst [vmem:[%s7 + $0x8] sm:$0xff] %v1659
  %1712 = vst [vmem:[%s7 + $0x10] sm:$0xff] %v1708
  %1713 = vst [vmem:[%s7 + $0x18] sm:$0xff] %v1709
  // Predicated region
  $region30: #{bottleneck_forward.1} parent=0 // pred_check
    _
  $region31: #{bottleneck_forward.1} parent=0 // pred_check_branch
    %1715 = sbr.rel (0) target = $region33
  $region32: #{bottleneck_forward.1} parent=0 // pred_region
    _
  $region33: #{bottleneck_forward.1} parent=0 // pred_fallthru
    _
  // Predicated region
  $region34: #{bottleneck_forward.1} parent=0 // pred_check
    _
  $region35: #{bottleneck_forward.1} parent=0 // pred_check_branch
    %1717 = sbr.rel (0) target = $region37
  $region36: #{bottleneck_forward.1} parent=0 // pred_region
    _
  $region37: #{bottleneck_forward.1} parent=0 // pred_fallthru
    _

</llo_original>
